<compile_context>
chip_gen: v5e
topology: v5e:2x2
jax: 0.10.0
libtpu: 0.0.40
codegen_flags: <defaults>
</compile_context>

<pallas_src>
import functools

import jax
import jax.numpy as jnp
from jax import lax
from jax.experimental import pallas as pl
from jax.experimental.pallas import tpu as pltpu


# Sublane offset of padded-column 0 inside the VMEM scratch.  Using 7 makes the
# interior *write* land at sublane offset 8 (tile aligned); only the reads sit
# at unaligned offsets (7/8/9), which lower to cheap shifted loads.
_COL0 = 7


def _fused_conv_block_kernel(patches_ref, w1_ref, b1_ref, w2_ref, b2_ref,
                             o_ref, y1p_ref, *, h, w):
    """Two fused 3x3 conv (stride 1, pad 1) + folded-BN bias + ReLU layers.

    patches_ref: (1, bt*H*W, 9*Cin)  pre-im2col'd layer-1 input (bt images)
    w1_ref     : (9*Cin, C1)         layer-1 weights, BN scale folded, im2col order
    b1_ref     : (1, C1)             layer-1 folded bias
    w2_ref     : (9, C1, C1)         layer-2 weights per tap, folded, (out, in)
    b2_ref     : (C1, 1)             layer-2 folded bias
    o_ref      : (1, C1, bt*H*W)     output, channel-major, lane-dense spatial
    y1p_ref    : (bt, H+2, scr_w, C1) VMEM scratch for the padded layer-1 act
    """
    bt = y1p_ref.shape[0]
    c1 = y1p_ref.shape[-1]
    hw = h * w
    m = bt * hw

    # ---- layer 1: pre-im2col'd patches -> ONE MXU matmul ---------------------
    a1 = patches_ref[0]                                      # (bt*HW, 9*Cin)
    y1 = jnp.dot(a1, w1_ref[...], preferred_element_type=jnp.float32)
    y1 = jnp.maximum(y1 + b1_ref[...], 0.0)                  # (bt*HW, C1)

    # ---- zero ONLY the 1-pixel ring that layer 2 reads (not the whole scratch)
    y1p_ref[:, 0:1, _COL0:_COL0 + w + 2, :] = jnp.zeros((bt, 1, w + 2, c1), jnp.float32)
    y1p_ref[:, h + 1:h + 2, _COL0:_COL0 + w + 2, :] = jnp.zeros((bt, 1, w + 2, c1), jnp.float32)
    y1p_ref[:, 1:h + 1, _COL0:_COL0 + 1, :] = jnp.zeros((bt, h, 1, c1), jnp.float32)
    y1p_ref[:, 1:h + 1, _COL0 + w + 1:_COL0 + w + 2, :] = jnp.zeros((bt, h, 1, c1), jnp.float32)

    # Interior write (tile-aligned at sublane offset _COL0 + 1 == 8).
    y1p_ref[:, 1:h + 1, _COL0 + 1:_COL0 + 1 + w, :] = y1.reshape(bt, h, w, c1)

    # ---- layer 2: nine accumulated per-tap trans-B matmuls -------------------
    # Result orientation (C1, bt*HW) puts channels on sublanes and the flattened
    # spatial on the 128-lane axis -> lane-dense, unmasked, channel-major store.
    acc = jnp.zeros((c1, m), jnp.float32)
    for kh in range(3):
        for kw in range(3):
            tap = kh * 3 + kw
            y1k = y1p_ref[:, kh:kh + h, _COL0 + kw:_COL0 + kw + w, :].reshape(m, c1)
            acc = acc + lax.dot_general(
                w2_ref[tap], y1k,
                dimension_numbers=(((1,), (1,)), ((), ())),
                preferred_element_type=jnp.float32)          # (C1, bt*HW)

    y2 = jnp.maximum(acc + b2_ref[...], 0.0)
    o_ref[0] = y2.astype(o_ref.dtype)


def _pick_batch_tile(n):
    """Images per grid step: amortize per-step overhead but keep the grid even
    (both v7x TensorCores busy under "parallel") and the scratch small."""
    if n <= 2:
        return 1
    best = 1
    for bt in range(2, min(n, 8) + 1):
        if n % bt == 0 and (n // bt) % 2 == 0:
            best = bt
    return best


def conv_bottleneck_forward_pallas(params, x_nchw, *, batch_tile=None):
    """Forward pass of ConvBottleneckBlock (layer_depth=2) as one fused kernel."""
    l1, l2 = params                       # fused kernel implements layer_depth=2
    n, cin, h, w = x_nchw.shape
    c1 = l1["w"].shape[-1]
    hw = h * w

    bt = batch_tile if batch_tile is not None else _pick_batch_tile(n)
    assert n % bt == 0, (n, bt)
    n_steps = n // bt

    # Fold eval-mode BN scale into the conv weights (conv is linear in w) and
    # reshape to the layouts the kernel expects.  Tiny wrapper-side math only.
    w1 = (l1["w"] * l1["scale"]).reshape(9 * cin, c1)                    # (9*Cin, C1)
    b1 = l1["bias"].reshape(1, c1)
    w2 = jnp.transpose((l2["w"] * l2["scale"]).reshape(9, c1, c1),
                       (0, 2, 1))                                        # (9, C1out, C1in)
    b2 = l2["bias"].reshape(c1, 1)

    # Layer-1 im2col in the wrapper: one cheap XLA pad + concat.  HBM traffic
    # grows only ~9x on an 8-channel input and every DMA'd lane is now useful.
    x_nhwc = jnp.transpose(x_nchw, (0, 2, 3, 1))
    x_pad = jnp.pad(x_nhwc, ((0, 0), (1, 1), (1, 1), (0, 0)))
    patches = jnp.concatenate(
        [x_pad[:, kh:kh + h, kw:kw + w, :] for kh in range(3) for kw in range(3)],
        axis=-1)                                                          # (N, H, W, 9*Cin)
    patches = patches.reshape(n_steps, bt * hw, 9 * cin)

    scr_w = ((_COL0 + w + 2 + 7) // 8) * 8      # scratch width (>= _COL0 + W + 2)

    kernel = functools.partial(_fused_conv_block_kernel, h=h, w=w)
    out_flat = pl.pallas_call(
        kernel,
        out_shape=jax.ShapeDtypeStruct((n_steps, c1, bt * hw), x_nchw.dtype),
        grid=(n_steps,),
        in_specs=[
            pl.BlockSpec((1, bt * hw, 9 * cin), lambda i: (i, 0, 0)),
            pl.BlockSpec((9 * cin, c1), lambda i: (0, 0)),
            pl.BlockSpec((1, c1), lambda i: (0, 0)),
            pl.BlockSpec((9, c1, c1), lambda i: (0, 0, 0)),
            pl.BlockSpec((c1, 1), lambda i: (0, 0)),
        ],
        out_specs=pl.BlockSpec((1, c1, bt * hw), lambda i: (i, 0, 0)),
        scratch_shapes=[pltpu.VMEM((bt, h + 2, scr_w, c1), jnp.float32)],
        # "parallel": on v7x each TensorCore takes alternating grid steps; on
        # single-TC v5e/v6e this is just a short serial loop.
        compiler_params=pltpu.CompilerParams(
            dimension_semantics=("parallel",)),
    )(patches, w1, b1, w2, b2)

    # (n_steps, C1, bt, H, W) -> (N, C1, H, W): tiny wrapper-side layout
    # plumbing so the kernel's store stays lane-dense and un-transposed.
    out = out_flat.reshape(n_steps, c1, bt, h, w)
    out = jnp.transpose(out, (0, 2, 1, 3, 4))
    return out.reshape(n, c1, h, w)


# ----------------------------------------------------------------------------
# Parameter construction (matches PyTorch defaults, BN in eval mode).
# ----------------------------------------------------------------------------
def delayed_fm(layer, fm_delay):
    return max(0, layer - fm_delay)


def init_conv_bottleneck_params(key, base_fm, layer_num, fm_delay=0,
                                layer_depth=2, kernel_size=3, eps=1e-5):
    in_channels = base_fm * 2 ** (delayed_fm(layer_num, fm_delay) - 1)
    out_channels = base_fm * 2 ** delayed_fm(layer_num, fm_delay)

    layers = []
    cin = in_channels
    for _ in range(layer_depth):
        key, k_w, k_b = jax.random.split(key, 3)
        fan_in = cin * kernel_size * kernel_size
        bound = 1.0 / (fan_in ** 0.5)
        w = jax.random.uniform(k_w, (kernel_size, kernel_size, cin, out_channels),
                               jnp.float32, -bound, bound)            # HWIO
        conv_b = jax.random.uniform(k_b, (out_channels,), jnp.float32, -bound, bound)
        # BatchNorm2d eval-mode parameters (fresh-module defaults).
        gamma = jnp.ones((out_channels,), jnp.float32)
        beta = jnp.zeros((out_channels,), jnp.float32)
        running_mean = jnp.zeros((out_channels,), jnp.float32)
        running_var = jnp.ones((out_channels,), jnp.float32)
        scale = gamma / jnp.sqrt(running_var + eps)
        bias = (conv_b - running_mean) * scale + beta
        layers.append({"w": w, "scale": scale, "bias": bias})
        cin = out_channels
    return layers, in_channels, out_channels


# ----------------------------------------------------------------------------
# Pure-JAX reference (un-folded conv + affine + ReLU) for correctness checking.
# ----------------------------------------------------------------------------
def reference_forward(params, x_nchw):
    x = jnp.transpose(x_nchw, (0, 2, 3, 1))
    for layer in params:
        y = lax.conv_general_dilated(
            x, layer["w"], window_strides=(1, 1), padding="SAME",
            dimension_numbers=("NHWC", "HWIO", "NHWC"))
        y = y * layer["scale"] + layer["bias"]
        x = jnp.maximum(y, 0.0)
    return jnp.transpose(x, (0, 3, 1, 2))


if __name__ == "__main__":
    key = jax.random.PRNGKey(0)
    key, kx = jax.random.split(key)

    base_fm, layer_num, layer_depth = 8, 1, 2
    params, cin, cout = init_conv_bottleneck_params(
        key, base_fm=base_fm, layer_num=layer_num, layer_depth=layer_depth)

    N, H, W = 2, 16, 16
    x = jax.random.normal(kx, (N, cin, H, W), jnp.float32)   # NCHW, like PyTorch

    fwd = jax.jit(conv_bottleneck_forward_pallas)
    out = jax.block_until_ready(fwd(params, x))
    assert out.shape == (N, cout, H, W), out.shape

    ref = reference_forward(params, x)
    max_err = float(jnp.max(jnp.abs(out - ref)))
    assert jnp.allclose(out, ref, atol=1e-4, rtol=1e-4), max_err

    print("KERNEL_OK")
</pallas_src>

<mosaic_0001>
module attributes {stable_mosaic.version = 11 : i64} {
  func.func @_fused_conv_block_kernel(%arg0: i32, %arg1: memref<1x256x72xf32, #tpu.memory_space<vmem>>, %arg2: memref<72x16xf32, #tpu.memory_space<vmem>>, %arg3: memref<1x16xf32, #tpu.memory_space<vmem>>, %arg4: memref<9x16x16xf32, #tpu.memory_space<vmem>>, %arg5: memref<16x1xf32, #tpu.memory_space<vmem>>, %arg6: memref<1x16x256xf32, #tpu.memory_space<vmem>>, %arg7: memref<1x18x32x16xf32, #tpu.memory_space<vmem>>) attributes {dimension_semantics = [#tpu.dimension_semantics<parallel>], iteration_bounds = array<i64: 2>, scalar_prefetch = 0 : i64, scratch_operands = 1 : i64, tpu.core_type = #tpu.core_type<tc>, window_params = [{transform_indices = @transform_0, window_bounds = array<i64: 1, 256, 72>}, {pipeline_mode = #tpu.pipeline_mode<synchronous>, transform_indices = @transform_1, window_bounds = array<i64: 72, 16>}, {pipeline_mode = #tpu.pipeline_mode<synchronous>, transform_indices = @transform_2, window_bounds = array<i64: 1, 16>}, {pipeline_mode = #tpu.pipeline_mode<synchronous>, transform_indices = @transform_3, window_bounds = array<i64: 9, 16, 16>}, {pipeline_mode = #tpu.pipeline_mode<synchronous>, transform_indices = @transform_4, window_bounds = array<i64: 16, 1>}, {transform_indices = @transform_5, window_bounds = array<i64: 1, 16, 256>}]} {
    %c0 = arith.constant 0 : index
    %c0_0 = arith.constant 0 : index
    %c0_1 = arith.constant 0 : index
    %0 = vector.load %arg1[%c0, %c0_0, %c0_1] : memref<1x256x72xf32, #tpu.memory_space<vmem>>, vector<1x256x72xf32>
    %1 = vector.shape_cast %0 : vector<1x256x72xf32> to vector<256x72xf32>
    %c0_2 = arith.constant 0 : index
    %c0_3 = arith.constant 0 : index
    %2 = vector.load %arg2[%c0_2, %c0_3] : memref<72x16xf32, #tpu.memory_space<vmem>>, vector<72x16xf32>
    %cst = arith.constant dense<0.000000e+00> : vector<256x16xf32>
    %3 = tpu.matmul %1, %2, %cst {dimension_numbers = #tpu.dot_dimension_numbers<[1], [0], [0], [1], [0, 0, 1, 1], [], []>} : vector<256x72xf32>, vector<72x16xf32>, vector<256x16xf32> -> vector<256x16xf32>
    %c0_4 = arith.constant 0 : index
    %c0_5 = arith.constant 0 : index
    %4 = vector.load %arg3[%c0_4, %c0_5] : memref<1x16xf32, #tpu.memory_space<vmem>>, vector<1x16xf32>
    %5 = vector.broadcast %4 : vector<1x16xf32> to vector<256x16xf32>
    %6 = arith.addf %3, %5 : vector<256x16xf32>
    %cst_6 = arith.constant 0.000000e+00 : f32
    %7 = vector.broadcast %cst_6 : f32 to vector<256x16xf32>
    %8 = arith.maximumf %6, %7 : vector<256x16xf32>
    %cst_7 = arith.constant 0.000000e+00 : f32
    %9 = vector.broadcast %cst_7 : f32 to vector<1x1x18x16xf32>
    %c0_8 = arith.constant 0 : index
    %c0_9 = arith.constant 0 : index
    %c7 = arith.constant 7 : index
    %c0_10 = arith.constant 0 : index
    %10 = vector.load %arg7[%c0_8, %c0_9, %c7, %c0_10] : memref<1x18x32x16xf32, #tpu.memory_space<vmem>>, vector<1x1x18x16xf32>
    tpu.vector_store %arg7[%c0_8, %c0_9, %c7, %c0_10], %9 {strides = array<i32>} : memref<1x18x32x16xf32, #tpu.memory_space<vmem>>, vector<1x1x18x16xf32>,
    %cst_11 = arith.constant 0.000000e+00 : f32
    %11 = vector.broadcast %cst_11 : f32 to vector<1x1x18x16xf32>
    %c0_12 = arith.constant 0 : index
    %c17 = arith.constant 17 : index
    %c7_13 = arith.constant 7 : index
    %c0_14 = arith.constant 0 : index
    %12 = vector.load %arg7[%c0_12, %c17, %c7_13, %c0_14] : memref<1x18x32x16xf32, #tpu.memory_space<vmem>>, vector<1x1x18x16xf32>
    tpu.vector_store %arg7[%c0_12, %c17, %c7_13, %c0_14], %11 {strides = array<i32>} : memref<1x18x32x16xf32, #tpu.memory_space<vmem>>, vector<1x1x18x16xf32>,
    %cst_15 = arith.constant 0.000000e+00 : f32
    %13 = vector.broadcast %cst_15 : f32 to vector<1x16x1x16xf32>
    %c0_16 = arith.constant 0 : index
    %c1 = arith.constant 1 : index
    %c7_17 = arith.constant 7 : index
    %c0_18 = arith.constant 0 : index
    %14 = vector.load %arg7[%c0_16, %c1, %c7_17, %c0_18] : memref<1x18x32x16xf32, #tpu.memory_space<vmem>>, vector<1x16x1x16xf32>
    tpu.vector_store %arg7[%c0_16, %c1, %c7_17, %c0_18], %13 {strides = array<i32>} : memref<1x18x32x16xf32, #tpu.memory_space<vmem>>, vector<1x16x1x16xf32>,
    %cst_19 = arith.constant 0.000000e+00 : f32
    %15 = vector.broadcast %cst_19 : f32 to vector<1x16x1x16xf32>
    %c0_20 = arith.constant 0 : index
    %c1_21 = arith.constant 1 : index
    %c24 = arith.constant 24 : index
    %c0_22 = arith.constant 0 : index
    %16 = vector.load %arg7[%c0_20, %c1_21, %c24, %c0_22] : memref<1x18x32x16xf32, #tpu.memory_space<vmem>>, vector<1x16x1x16xf32>
    tpu.vector_store %arg7[%c0_20, %c1_21, %c24, %c0_22], %15 {strides = array<i32>} : memref<1x18x32x16xf32, #tpu.memory_space<vmem>>, vector<1x16x1x16xf32>,
    %17 = vector.shape_cast %8 : vector<256x16xf32> to vector<1x16x16x16xf32>
    %c0_23 = arith.constant 0 : index
    %c1_24 = arith.constant 1 : index
    %c8 = arith.constant 8 : index
    %c0_25 = arith.constant 0 : index
    %18 = vector.load %arg7[%c0_23, %c1_24, %c8, %c0_25] : memref<1x18x32x16xf32, #tpu.memory_space<vmem>>, vector<1x16x16x16xf32>
    tpu.vector_store %arg7[%c0_23, %c1_24, %c8, %c0_25], %17 {strides = array<i32>} : memref<1x18x32x16xf32, #tpu.memory_space<vmem>>, vector<1x16x16x16xf32>,
    %cst_26 = arith.constant 0.000000e+00 : f32
    %19 = vector.broadcast %cst_26 : f32 to vector<16x256xf32>
    %c0_27 = arith.constant 0 : index
    %c0_28 = arith.constant 0 : index
    %c7_29 = arith.constant 7 : index
    %c0_30 = arith.constant 0 : index
    %20 = vector.load %arg7[%c0_27, %c0_28, %c7_29, %c0_30] : memref<1x18x32x16xf32, #tpu.memory_space<vmem>>, vector<1x16x16x16xf32>
    %21 = vector.shape_cast %20 : vector<1x16x16x16xf32> to vector<256x16xf32>
    %c0_31 = arith.constant 0 : index
    %c0_32 = arith.constant 0 : index
    %c0_33 = arith.constant 0 : index
    %22 = vector.load %arg4[%c0_31, %c0_32, %c0_33] : memref<9x16x16xf32, #tpu.memory_space<vmem>>, vector<1x16x16xf32>
    %23 = vector.shape_cast %22 : vector<1x16x16xf32> to vector<16x16xf32>
    %cst_34 = arith.constant dense<0.000000e+00> : vector<16x256xf32>
    %24 = tpu.matmul %23, %21, %cst_34 {dimension_numbers = #tpu.dot_dimension_numbers<[1], [1], [0], [0], [0, 0, 1, 0], [], []>} : vector<16x16xf32>, vector<256x16xf32>, vector<16x256xf32> -> vector<16x256xf32>
    %25 = arith.addf %19, %24 : vector<16x256xf32>
    %c0_35 = arith.constant 0 : index
    %c0_36 = arith.constant 0 : index
    %c8_37 = arith.constant 8 : index
    %c0_38 = arith.constant 0 : index
    %26 = vector.load %arg7[%c0_35, %c0_36, %c8_37, %c0_38] : memref<1x18x32x16xf32, #tpu.memory_space<vmem>>, vector<1x16x16x16xf32>
    %27 = vector.shape_cast %26 : vector<1x16x16x16xf32> to vector<256x16xf32>
    %c1_39 = arith.constant 1 : index
    %c0_40 = arith.constant 0 : index
    %c0_41 = arith.constant 0 : index
    %28 = vector.load %arg4[%c1_39, %c0_40, %c0_41] : memref<9x16x16xf32, #tpu.memory_space<vmem>>, vector<1x16x16xf32>
    %29 = vector.shape_cast %28 : vector<1x16x16xf32> to vector<16x16xf32>
    %cst_42 = arith.constant dense<0.000000e+00> : vector<16x256xf32>
    %30 = tpu.matmul %29, %27, %cst_42 {dimension_numbers = #tpu.dot_dimension_numbers<[1], [1], [0], [0], [0, 0, 1, 0], [], []>} : vector<16x16xf32>, vector<256x16xf32>, vector<16x256xf32> -> vector<16x256xf32>
    %31 = arith.addf %25, %30 : vector<16x256xf32>
    %c0_43 = arith.constant 0 : index
    %c0_44 = arith.constant 0 : index
    %c9 = arith.constant 9 : index
    %c0_45 = arith.constant 0 : index
    %32 = vector.load %arg7[%c0_43, %c0_44, %c9, %c0_45] : memref<1x18x32x16xf32, #tpu.memory_space<vmem>>, vector<1x16x16x16xf32>
    %33 = vector.shape_cast %32 : vector<1x16x16x16xf32> to vector<256x16xf32>
    %c2 = arith.constant 2 : index
    %c0_46 = arith.constant 0 : index
    %c0_47 = arith.constant 0 : index
    %34 = vector.load %arg4[%c2, %c0_46, %c0_47] : memref<9x16x16xf32, #tpu.memory_space<vmem>>, vector<1x16x16xf32>
    %35 = vector.shape_cast %34 : vector<1x16x16xf32> to vector<16x16xf32>
    %cst_48 = arith.constant dense<0.000000e+00> : vector<16x256xf32>
    %36 = tpu.matmul %35, %33, %cst_48 {dimension_numbers = #tpu.dot_dimension_numbers<[1], [1], [0], [0], [0, 0, 1, 0], [], []>} : vector<16x16xf32>, vector<256x16xf32>, vector<16x256xf32> -> vector<16x256xf32>
    %37 = arith.addf %31, %36 : vector<16x256xf32>
    %c0_49 = arith.constant 0 : index
    %c1_50 = arith.constant 1 : index
    %c7_51 = arith.constant 7 : index
    %c0_52 = arith.constant 0 : index
    %38 = vector.load %arg7[%c0_49, %c1_50, %c7_51, %c0_52] : memref<1x18x32x16xf32, #tpu.memory_space<vmem>>, vector<1x16x16x16xf32>
    %39 = vector.shape_cast %38 : vector<1x16x16x16xf32> to vector<256x16xf32>
    %c3 = arith.constant 3 : index
    %c0_53 = arith.constant 0 : index
    %c0_54 = arith.constant 0 : index
    %40 = vector.load %arg4[%c3, %c0_53, %c0_54] : memref<9x16x16xf32, #tpu.memory_space<vmem>>, vector<1x16x16xf32>
    %41 = vector.shape_cast %40 : vector<1x16x16xf32> to vector<16x16xf32>
    %cst_55 = arith.constant dense<0.000000e+00> : vector<16x256xf32>
    %42 = tpu.matmul %41, %39, %cst_55 {dimension_numbers = #tpu.dot_dimension_numbers<[1], [1], [0], [0], [0, 0, 1, 0], [], []>} : vector<16x16xf32>, vector<256x16xf32>, vector<16x256xf32> -> vector<16x256xf32>
    %43 = arith.addf %37, %42 : vector<16x256xf32>
    %c0_56 = arith.constant 0 : index
    %c1_57 = arith.constant 1 : index
    %c8_58 = arith.constant 8 : index
    %c0_59 = arith.constant 0 : index
    %44 = vector.load %arg7[%c0_56, %c1_57, %c8_58, %c0_59] : memref<1x18x32x16xf32, #tpu.memory_space<vmem>>, vector<1x16x16x16xf32>
    %45 = vector.shape_cast %44 : vector<1x16x16x16xf32> to vector<256x16xf32>
    %c4 = arith.constant 4 : index
    %c0_60 = arith.constant 0 : index
    %c0_61 = arith.constant 0 : index
    %46 = vector.load %arg4[%c4, %c0_60, %c0_61] : memref<9x16x16xf32, #tpu.memory_space<vmem>>, vector<1x16x16xf32>
    %47 = vector.shape_cast %46 : vector<1x16x16xf32> to vector<16x16xf32>
    %cst_62 = arith.constant dense<0.000000e+00> : vector<16x256xf32>
    %48 = tpu.matmul %47, %45, %cst_62 {dimension_numbers = #tpu.dot_dimension_numbers<[1], [1], [0], [0], [0, 0, 1, 0], [], []>} : vector<16x16xf32>, vector<256x16xf32>, vector<16x256xf32> -> vector<16x256xf32>
    %49 = arith.addf %43, %48 : vector<16x256xf32>
    %c0_63 = arith.constant 0 : index
    %c1_64 = arith.constant 1 : index
    %c9_65 = arith.constant 9 : index
    %c0_66 = arith.constant 0 : index
    %50 = vector.load %arg7[%c0_63, %c1_64, %c9_65, %c0_66] : memref<1x18x32x16xf32, #tpu.memory_space<vmem>>, vector<1x16x16x16xf32>
    %51 = vector.shape_cast %50 : vector<1x16x16x16xf32> to vector<256x16xf32>
    %c5 = arith.constant 5 : index
    %c0_67 = arith.constant 0 : index
    %c0_68 = arith.constant 0 : index
    %52 = vector.load %arg4[%c5, %c0_67, %c0_68] : memref<9x16x16xf32, #tpu.memory_space<vmem>>, vector<1x16x16xf32>
    %53 = vector.shape_cast %52 : vector<1x16x16xf32> to vector<16x16xf32>
    %cst_69 = arith.constant dense<0.000000e+00> : vector<16x256xf32>
    %54 = tpu.matmul %53, %51, %cst_69 {dimension_numbers = #tpu.dot_dimension_numbers<[1], [1], [0], [0], [0, 0, 1, 0], [], []>} : vector<16x16xf32>, vector<256x16xf32>, vector<16x256xf32> -> vector<16x256xf32>
    %55 = arith.addf %49, %54 : vector<16x256xf32>
    %c0_70 = arith.constant 0 : index
    %c2_71 = arith.constant 2 : index
    %c7_72 = arith.constant 7 : index
    %c0_73 = arith.constant 0 : index
    %56 = vector.load %arg7[%c0_70, %c2_71, %c7_72, %c0_73] : memref<1x18x32x16xf32, #tpu.memory_space<vmem>>, vector<1x16x16x16xf32>
    %57 = vector.shape_cast %56 : vector<1x16x16x16xf32> to vector<256x16xf32>
    %c6 = arith.constant 6 : index
    %c0_74 = arith.constant 0 : index
    %c0_75 = arith.constant 0 : index
    %58 = vector.load %arg4[%c6, %c0_74, %c0_75] : memref<9x16x16xf32, #tpu.memory_space<vmem>>, vector<1x16x16xf32>
    %59 = vector.shape_cast %58 : vector<1x16x16xf32> to vector<16x16xf32>
    %cst_76 = arith.constant dense<0.000000e+00> : vector<16x256xf32>
    %60 = tpu.matmul %59, %57, %cst_76 {dimension_numbers = #tpu.dot_dimension_numbers<[1], [1], [0], [0], [0, 0, 1, 0], [], []>} : vector<16x16xf32>, vector<256x16xf32>, vector<16x256xf32> -> vector<16x256xf32>
    %61 = arith.addf %55, %60 : vector<16x256xf32>
    %c0_77 = arith.constant 0 : index
    %c2_78 = arith.constant 2 : index
    %c8_79 = arith.constant 8 : index
    %c0_80 = arith.constant 0 : index
    %62 = vector.load %arg7[%c0_77, %c2_78, %c8_79, %c0_80] : memref<1x18x32x16xf32, #tpu.memory_space<vmem>>, vector<1x16x16x16xf32>
    %63 = vector.shape_cast %62 : vector<1x16x16x16xf32> to vector<256x16xf32>
    %c7_81 = arith.constant 7 : index
    %c0_82 = arith.constant 0 : index
    %c0_83 = arith.constant 0 : index
    %64 = vector.load %arg4[%c7_81, %c0_82, %c0_83] : memref<9x16x16xf32, #tpu.memory_space<vmem>>, vector<1x16x16xf32>
    %65 = vector.shape_cast %64 : vector<1x16x16xf32> to vector<16x16xf32>
    %cst_84 = arith.constant dense<0.000000e+00> : vector<16x256xf32>
    %66 = tpu.matmul %65, %63, %cst_84 {dimension_numbers = #tpu.dot_dimension_numbers<[1], [1], [0], [0], [0, 0, 1, 0], [], []>} : vector<16x16xf32>, vector<256x16xf32>, vector<16x256xf32> -> vector<16x256xf32>
    %67 = arith.addf %61, %66 : vector<16x256xf32>
    %c0_85 = arith.constant 0 : index
    %c2_86 = arith.constant 2 : index
    %c9_87 = arith.constant 9 : index
    %c0_88 = arith.constant 0 : index
    %68 = vector.load %arg7[%c0_85, %c2_86, %c9_87, %c0_88] : memref<1x18x32x16xf32, #tpu.memory_space<vmem>>, vector<1x16x16x16xf32>
    %69 = vector.shape_cast %68 : vector<1x16x16x16xf32> to vector<256x16xf32>
    %c8_89 = arith.constant 8 : index
    %c0_90 = arith.constant 0 : index
    %c0_91 = arith.constant 0 : index
    %70 = vector.load %arg4[%c8_89, %c0_90, %c0_91] : memref<9x16x16xf32, #tpu.memory_space<vmem>>, vector<1x16x16xf32>
    %71 = vector.shape_cast %70 : vector<1x16x16xf32> to vector<16x16xf32>
    %cst_92 = arith.constant dense<0.000000e+00> : vector<16x256xf32>
    %72 = tpu.matmul %71, %69, %cst_92 {dimension_numbers = #tpu.dot_dimension_numbers<[1], [1], [0], [0], [0, 0, 1, 0], [], []>} : vector<16x16xf32>, vector<256x16xf32>, vector<16x256xf32> -> vector<16x256xf32>
    %73 = arith.addf %67, %72 : vector<16x256xf32>
    %c0_93 = arith.constant 0 : index
    %c0_94 = arith.constant 0 : index
    %74 = vector.load %arg5[%c0_93, %c0_94] : memref<16x1xf32, #tpu.memory_space<vmem>>, vector<16x1xf32>
    %75 = vector.broadcast %74 : vector<16x1xf32> to vector<16x256xf32>
    %76 = arith.addf %73, %75 : vector<16x256xf32>
    %cst_95 = arith.constant 0.000000e+00 : f32
    %77 = vector.broadcast %cst_95 : f32 to vector<16x256xf32>
    %78 = arith.maximumf %76, %77 : vector<16x256xf32>
    %c0_96 = arith.constant 0 : index
    %c0_97 = arith.constant 0 : index
    %c0_98 = arith.constant 0 : index
    %79 = vector.load %arg6[%c0_96, %c0_97, %c0_98] : memref<1x16x256xf32, #tpu.memory_space<vmem>>, vector<1x16x256xf32>
    %80 = vector.shape_cast %79 : vector<1x16x256xf32> to vector<16x256xf32>
    %81 = vector.shape_cast %78 : vector<16x256xf32> to vector<1x16x256xf32>
    tpu.vector_store %arg6[%c0_96, %c0_97, %c0_98], %81 {strides = array<i32>} : memref<1x16x256xf32, #tpu.memory_space<vmem>>, vector<1x16x256xf32>,
    return
  }
  func.func @transform_0(%arg0: i32) -> (i32, i32, i32) {
    %c0_i32 = arith.constant 0 : i32
    %c0_i32_0 = arith.constant 0 : i32
    %c0_i32_1 = arith.constant 0 : i32
    return %arg0, %c0_i32, %c0_i32_0 : i32, i32, i32
  }
  func.func @transform_1(%arg0: i32) -> (i32, i32) {
    %c0_i32 = arith.constant 0 : i32
    %c0_i32_0 = arith.constant 0 : i32
    %c0_i32_1 = arith.constant 0 : i32
    return %c0_i32, %c0_i32_0 : i32, i32
  }
  func.func @transform_2(%arg0: i32) -> (i32, i32) {
    %c0_i32 = arith.constant 0 : i32
    %c0_i32_0 = arith.constant 0 : i32
    %c0_i32_1 = arith.constant 0 : i32
    return %c0_i32, %c0_i32_0 : i32, i32
  }
  func.func @transform_3(%arg0: i32) -> (i32, i32, i32) {
    %c0_i32 = arith.constant 0 : i32
    %c0_i32_0 = arith.constant 0 : i32
    %c0_i32_1 = arith.constant 0 : i32
    %c0_i32_2 = arith.constant 0 : i32
    return %c0_i32, %c0_i32_0, %c0_i32_1 : i32, i32, i32
  }
  func.func @transform_4(%arg0: i32) -> (i32, i32) {
    %c0_i32 = arith.constant 0 : i32
    %c0_i32_0 = arith.constant 0 : i32
    %c0_i32_1 = arith.constant 0 : i32
    return %c0_i32, %c0_i32_0 : i32, i32
  }
  func.func @transform_5(%arg0: i32) -> (i32, i32, i32) {
    %c0_i32 = arith.constant 0 : i32
    %c0_i32_0 = arith.constant 0 : i32
    %c0_i32_1 = arith.constant 0 : i32
    return %arg0, %c0_i32, %c0_i32_0 : i32, i32, i32
  }
}

</mosaic_0001>

<llo_original>
// kernel: conv_bottleneck_forward_pallas.1
$region0: #{conv_bottleneck_forward_pallas.1}
  #allocation0 [shape = 'u32[]', space=smem, size = 0x4, offset = 0x4, fixed_abs, tag = 'smem constant byte address 0x4 - core index']
  #allocation1 [shape = 'u32[72,128]{1,0:T(1,128)}', space=vmem, size = 0x9000, scoped, tag = 'internal scratch']
  #allocation2 [shape = 'f32[1,18,32,16]{3,2,1,0:T(8,128)}', space=vmem, size = 0x48000, scoped, tag = 'scratch operand']
  %s0 = inlined_call_operand.vmem [shape: f32[2,256,72], index: 0, kind: input, shape index: {}]
  %s1 = inlined_call_operand.vmem [shape: f32[72,16], index: 1, kind: input, shape index: {}]
  %s2 = inlined_call_operand.vmem [shape: f32[1,16], index: 2, kind: input, shape index: {}]
  %s3 = inlined_call_operand.vmem [shape: f32[9,16,16], index: 3, kind: input, shape index: {}]
  %s4 = inlined_call_operand.vmem [shape: f32[16,1], index: 4, kind: input, shape index: {}]
  %s5 = inlined_call_operand.vmem [shape: f32[2,16,256], index: 5, kind: output, shape index: {}]
  %s6 = sld [smem:[#allocation0]]
  $region53: #{conv_bottleneck_forward_pallas.1} parent=0
    _
  %s8 = ssub.s32 1, %s6
  %s9 = scalar_select 0, %s8, %s6
  loop: start=0, step=1, limit=4
  $region2: #{conv_bottleneck_forward_pallas.1} parent=0 // loop_pre_header
    _
  $region3: #{conv_bottleneck_forward_pallas.1} parent=0 // loop_header
    %s11 = sphi 0, %s15
    %p12 = scmp.ge.s32.totalorder %s11, 4
    %s21 = sphi 0, %s23
    %s24 = sphi 0, %s21
    %s25 = sphi 0, %s24
    %s41 = sphi 0, %s25
    %s45 = sphi 0, %s45
    %s47 = sphi 0, %s45
    %s48 = sphi 0, %s47
    %s62 = sphi 0, %s48
    %s66 = sphi 0, %s66
    %s68 = sphi 0, %s66
    %s69 = sphi 0, %s68
    %s83 = sphi 0, %s69
    %s87 = sphi 0, %s87
    %s89 = sphi 0, %s87
    %s90 = sphi 0, %s89
    %s104 = sphi 0, %s90
    %s108 = sphi 0, %s108
    %s110 = sphi 0, %s108
    %s111 = sphi 0, %s110
    %s125 = sphi 0, %s111
    %s131 = sphi 0, %s133
    %s134 = sphi 0, %s131
    %s135 = sphi 0, %s134
    %s151 = sphi 0, %s135
  $region4: #{conv_bottleneck_forward_pallas.1} parent=0 // loop_header_branch
    %14 = sbr.rel (%p12) target = $region8
  $region5: #{conv_bottleneck_forward_pallas.1} parent=0 // loop_body
    %s16 = ssub.s32 %s11, 1
    %s17 = ssub.s32 %s11, 2
    %s18 = sadd.s32 %s11, 1
    %s19 = ssub.s32 %s11, %s18
    %p20 = scmp.eq.s32.totalorder %s19, 0
    %s22 = sadd.s32 %s21, 1
    %s23 = scalar_select %p20, %s21, %s22
    %p26 = pneg %p20
    %p27 = scmp.eq.s32.totalorder %s11, 1
    %p28 = por %p26, %p27
    %p29 = scmp.ne.s32.totalorder %s21, %s24
    %p30 = scmp.eq.s32.totalorder %s11, 0
    %p31 = por %p29, %p30
    %p32 = scmp.ne.s32.totalorder %s21, %s24
    %p33 = scmp.eq.s32.totalorder %s16, 1
    %p34 = por %p32, %p33
    %p35 = scmp.ne.s32.totalorder %s24, %s25
    %p36 = scmp.eq.s32.totalorder %s16, 0
    %p37 = por %p35, %p36
    %p38 = scmp.ne.s32.totalorder %s24, %s25
    %p39 = scmp.eq.s32.totalorder %s17, 1
    %p40 = por %p38, %p39
    %p42 = scmp.ne.s32.totalorder %s25, %s41
    %p43 = scmp.eq.s32.totalorder %s17, 0
    %p44 = por %p42, %p43
    %s46 = sadd.s32 %s45, 1
    %p49 = scmp.eq.s32.totalorder %s11, 1
    %p50 = scmp.ne.s32.totalorder %s45, %s47
    %p51 = scmp.eq.s32.totalorder %s11, 0
    %p52 = por %p50, %p51
    %p53 = scmp.ne.s32.totalorder %s45, %s47
    %p54 = scmp.eq.s32.totalorder %s16, 1
    %p55 = por %p53, %p54
    %p56 = scmp.ne.s32.totalorder %s47, %s48
    %p57 = scmp.eq.s32.totalorder %s16, 0
    %p58 = por %p56, %p57
    %p59 = scmp.ne.s32.totalorder %s47, %s48
    %p60 = scmp.eq.s32.totalorder %s17, 1
    %p61 = por %p59, %p60
    %p63 = scmp.ne.s32.totalorder %s48, %s62
    %p64 = scmp.eq.s32.totalorder %s17, 0
    %p65 = por %p63, %p64
    %s67 = sadd.s32 %s66, 1
    %p70 = scmp.eq.s32.totalorder %s11, 1
    %p71 = scmp.ne.s32.totalorder %s66, %s68
    %p72 = scmp.eq.s32.totalorder %s11, 0
    %p73 = por %p71, %p72
    %p74 = scmp.ne.s32.totalorder %s66, %s68
    %p75 = scmp.eq.s32.totalorder %s16, 1
    %p76 = por %p74, %p75
    %p77 = scmp.ne.s32.totalorder %s68, %s69
    %p78 = scmp.eq.s32.totalorder %s16, 0
    %p79 = por %p77, %p78
    %p80 = scmp.ne.s32.totalorder %s68, %s69
    %p81 = scmp.eq.s32.totalorder %s17, 1
    %p82 = por %p80, %p81
    %p84 = scmp.ne.s32.totalorder %s69, %s83
    %p85 = scmp.eq.s32.totalorder %s17, 0
    %p86 = por %p84, %p85
    %s88 = sadd.s32 %s87, 1
    %p91 = scmp.eq.s32.totalorder %s11, 1
    %p92 = scmp.ne.s32.totalorder %s87, %s89
    %p93 = scmp.eq.s32.totalorder %s11, 0
    %p94 = por %p92, %p93
    %p95 = scmp.ne.s32.totalorder %s87, %s89
    %p96 = scmp.eq.s32.totalorder %s16, 1
    %p97 = por %p95, %p96
    %p98 = scmp.ne.s32.totalorder %s89, %s90
    %p99 = scmp.eq.s32.totalorder %s16, 0
    %p100 = por %p98, %p99
    %p101 = scmp.ne.s32.totalorder %s89, %s90
    %p102 = scmp.eq.s32.totalorder %s17, 1
    %p103 = por %p101, %p102
    %p105 = scmp.ne.s32.totalorder %s90, %s104
    %p106 = scmp.eq.s32.totalorder %s17, 0
    %p107 = por %p105, %p106
    %s109 = sadd.s32 %s108, 1
    %p112 = scmp.eq.s32.totalorder %s11, 1
    %p113 = scmp.ne.s32.totalorder %s108, %s110
    %p114 = scmp.eq.s32.totalorder %s11, 0
    %p115 = por %p113, %p114
    %p116 = scmp.ne.s32.totalorder %s108, %s110
    %p117 = scmp.eq.s32.totalorder %s16, 1
    %p118 = por %p116, %p117
    %p119 = scmp.ne.s32.totalorder %s110, %s111
    %p120 = scmp.eq.s32.totalorder %s16, 0
    %p121 = por %p119, %p120
    %p122 = scmp.ne.s32.totalorder %s110, %s111
    %p123 = scmp.eq.s32.totalorder %s17, 1
    %p124 = por %p122, %p123
    %p126 = scmp.ne.s32.totalorder %s111, %s125
    %p127 = scmp.eq.s32.totalorder %s17, 0
    %p128 = por %p126, %p127
    %s129 = ssub.s32 %s11, %s18
    %p130 = scmp.eq.s32.totalorder %s129, 0
    %s132 = sadd.s32 %s131, 1
    %s133 = scalar_select %p130, %s131, %s132
    %p136 = pneg %p130
    %p137 = scmp.eq.s32.totalorder %s11, 1
    %p138 = por %p136, %p137
    %p139 = scmp.ne.s32.totalorder %s131, %s134
    %p140 = scmp.eq.s32.totalorder %s11, 0
    %p141 = por %p139, %p140
    %p142 = scmp.ne.s32.totalorder %s131, %s134
    %p143 = scmp.eq.s32.totalorder %s16, 1
    %p144 = por %p142, %p143
    %p145 = scmp.ne.s32.totalorder %s134, %s135
    %p146 = scmp.eq.s32.totalorder %s16, 0
    %p147 = por %p145, %p146
    %p148 = scmp.ne.s32.totalorder %s134, %s135
    %p149 = scmp.eq.s32.totalorder %s17, 1
    %p150 = por %p148, %p149
    %p152 = scmp.ne.s32.totalorder %s135, %s151
    %p153 = scmp.eq.s32.totalorder %s17, 0
    %p154 = por %p152, %p153
    %p155 = scmp.le.s32.totalorder 1, %s11
    %p156 = scmp.lt.s32.totalorder %s11, 3
    %p157 = pnand %p155, %p156
    %p158 = pneg %p157
    // Predicated region
    $region9: #{conv_bottleneck_forward_pallas.1} parent=5 // pred_check
      _
    $region10: #{conv_bottleneck_forward_pallas.1} parent=5 // pred_check_branch
      %160 = sbr.rel (%p157) target = $region12
    $region11: #{conv_bottleneck_forward_pallas.1} parent=5 // pred_region
      %s161 = ssub.s32 %s11, 1
      // Predicated region
      $region13: #{conv_bottleneck_forward_pallas.1} parent=11 // pred_check
        %p162 = pneg %p58
      $region14: #{conv_bottleneck_forward_pallas.1} parent=11 // pred_check_branch
        %164 = sbr.rel (%p162) target = $region16
      $region15: #{conv_bottleneck_forward_pallas.1} parent=11 // pred_region
        _
      $region16: #{conv_bottleneck_forward_pallas.1} parent=11 // pred_fallthru
        _
      // Predicated region
      $region17: #{conv_bottleneck_forward_pallas.1} parent=11 // pred_check
        %p165 = pneg %p79
      $region18: #{conv_bottleneck_forward_pallas.1} parent=11 // pred_check_branch
        %167 = sbr.rel (%p165) target = $region20
      $region19: #{conv_bottleneck_forward_pallas.1} parent=11 // pred_region
        _
      $region20: #{conv_bottleneck_forward_pallas.1} parent=11 // pred_fallthru
        _
      // Predicated region
      $region21: #{conv_bottleneck_forward_pallas.1} parent=11 // pred_check
        %p168 = pneg %p100
      $region22: #{conv_bottleneck_forward_pallas.1} parent=11 // pred_check_branch
        %170 = sbr.rel (%p168) target = $region24
      $region23: #{conv_bottleneck_forward_pallas.1} parent=11 // pred_region
        _
      $region24: #{conv_bottleneck_forward_pallas.1} parent=11 // pred_fallthru
        _
      // Predicated region
      $region25: #{conv_bottleneck_forward_pallas.1} parent=11 // pred_check
        %p171 = pneg %p121
      $region26: #{conv_bottleneck_forward_pallas.1} parent=11 // pred_check_branch
        %173 = sbr.rel (%p171) target = $region28
      $region27: #{conv_bottleneck_forward_pallas.1} parent=11 // pred_region
        _
      $region28: #{conv_bottleneck_forward_pallas.1} parent=11 // pred_fallthru
        _
    $region12: #{conv_bottleneck_forward_pallas.1} parent=5 // pred_fallthru
      _
    %p174 = scmp.lt.s32.totalorder %s11, 2
    // Predicated region
    $region29: #{conv_bottleneck_forward_pallas.1} parent=5 // pred_check
      %p175 = pneg %p174
    $region30: #{conv_bottleneck_forward_pallas.1} parent=5 // pred_check_branch
      %177 = sbr.rel (%p175) target = $region32
    $region31: #{conv_bottleneck_forward_pallas.1} parent=5 // pred_region
      // Predicated region
      $region33: #{conv_bottleneck_forward_pallas.1} parent=31 // pred_check
        %p178 = pneg %p31
      $region34: #{conv_bottleneck_forward_pallas.1} parent=31 // pred_check_branch
        %180 = sbr.rel (%p178) target = $region36
      $region35: #{conv_bottleneck_forward_pallas.1} parent=31 // pred_region
        %p181 = scmp.lt.s32.totalorder %s11, 1
        %s182 = scalar_select %p181, %s11, 1
        %s183 = smul.addr %s182, 32
        %s184 = smul.addr %s183, 8
        %s185 = scalar_lea.vmem %s0, %s184
      $region36: #{conv_bottleneck_forward_pallas.1} parent=31 // pred_fallthru
        _
    $region32: #{conv_bottleneck_forward_pallas.1} parent=5 // pred_fallthru
      _
    %p186 = scmp.le.s32.totalorder 1, %s11
    %p187 = scmp.lt.s32.totalorder %s11, 3
    %p188 = pnand %p186, %p187
    %p189 = pneg %p188
    // Predicated region
    $region37: #{conv_bottleneck_forward_pallas.1} parent=5 // pred_check
      _
    $region38: #{conv_bottleneck_forward_pallas.1} parent=5 // pred_check_branch
      %191 = sbr.rel (%p188) target = $region40
    $region39: #{conv_bottleneck_forward_pallas.1} parent=5 // pred_region
      %s192 = ssub.s32 %s11, 1
      %p193 = scmp.lt.s32.totalorder %s16, 1
      %s194 = scalar_select %p193, %s16, 1
      %s195 = smul.addr %s194, 32
      %s196 = smul.addr %s195, 8
      %s197 = scalar_lea.vmem %s0, %s196
      %p198 = pneg %p37
      %p199 = pneg %p34
      %p200 = pneg %p58
      %p201 = pneg %p55
      %p202 = pneg %p79
      %p203 = pneg %p76
      %p204 = pneg %p100
      %p205 = pneg %p97
      %p206 = pneg %p121
      %p207 = pneg %p118
      %p208 = pneg %p147
      %p209 = pneg %p144
      %p210 = scmp.lt.s32.totalorder %s16, 1
      %s211 = scalar_select %p210, %s16, 1
      %s212 = smul.addr %s211, 4
      %s213 = smul.addr %s212, 8
      %s214 = scalar_lea.vmem %s5, %s213
      %p215 = scmp.lt.s32.totalorder %s16, 1
      %s216 = scalar_select %p215, %s16, 1
      %s217 = smul.addr %s216, 32
      %s218 = smul.addr %s217, 8
      %s219 = scalar_lea.vmem %s0, %s218
      %p220 = scmp.lt.s32.totalorder %s16, 1
      %s221 = scalar_select %p220, %s16, 1
      %s222 = smul.addr %s221, 4
      %s223 = smul.addr %s222, 8
      %s224 = scalar_lea.vmem %s5, %s223
      %v225 = vld [vmem:[%s219] sm:$0xff]
      %v226 = vld [vmem:[%s219 + $0x8] sm:$0xff]
      %v227 = vld [vmem:[%s219 + $0x10] sm:$0xff]
      %v228 = vld [vmem:[%s219 + $0x18] sm:$0xff]
      %v229 = vld [vmem:[%s219 + $0x20] sm:$0xff]
      %v230 = vld [vmem:[%s219 + $0x28] sm:$0xff]
      %v231 = vld [vmem:[%s219 + $0x30] sm:$0xff]
      %v232 = vld [vmem:[%s219 + $0x38] sm:$0xff]
      %v233 = vld [vmem:[%s219 + $0x40] sm:$0xff]
      %v234 = vld [vmem:[%s219 + $0x48] sm:$0xff]
      %v235 = vld [vmem:[%s219 + $0x50] sm:$0xff]
      %v236 = vld [vmem:[%s219 + $0x58] sm:$0xff]
      %v237 = vld [vmem:[%s219 + $0x60] sm:$0xff]
      %v238 = vld [vmem:[%s219 + $0x68] sm:$0xff]
      %v239 = vld [vmem:[%s219 + $0x70] sm:$0xff]
      %v240 = vld [vmem:[%s219 + $0x78] sm:$0xff]
      %v241 = vld [vmem:[%s219 + $0x80] sm:$0xff]
      %v242 = vld [vmem:[%s219 + $0x88] sm:$0xff]
      %v243 = vld [vmem:[%s219 + $0x90] sm:$0xff]
      %v244 = vld [vmem:[%s219 + $0x98] sm:$0xff]
      %v245 = vld [vmem:[%s219 + $0xa0] sm:$0xff]
      %v246 = vld [vmem:[%s219 + $0xa8] sm:$0xff]
      %v247 = vld [vmem:[%s219 + $0xb0] sm:$0xff]
      %v248 = vld [vmem:[%s219 + $0xb8] sm:$0xff]
      %v249 = vld [vmem:[%s219 + $0xc0] sm:$0xff]
      %v250 = vld [vmem:[%s219 + $0xc8] sm:$0xff]
      %v251 = vld [vmem:[%s219 + $0xd0] sm:$0xff]
      %v252 = vld [vmem:[%s219 + $0xd8] sm:$0xff]
      %v253 = vld [vmem:[%s219 + $0xe0] sm:$0xff]
      %v254 = vld [vmem:[%s219 + $0xe8] sm:$0xff]
      %v255 = vld [vmem:[%s219 + $0xf0] sm:$0xff]
      %v256 = vld [vmem:[%s219 + $0xf8] sm:$0xff]
      %v257 = vld [vmem:[%s1] sm:$0xff]
      %v258 = vld [vmem:[%s1 + $0x8] sm:$0xff]
      %v259 = vld [vmem:[%s1 + $0x10] sm:$0xff]
      %v260 = vld [vmem:[%s1 + $0x18] sm:$0xff]
      %v261 = vld [vmem:[%s1 + $0x20] sm:$0xff]
      %v262 = vld [vmem:[%s1 + $0x28] sm:$0xff]
      %v263 = vld [vmem:[%s1 + $0x30] sm:$0xff]
      %v264 = vld [vmem:[%s1 + $0x38] sm:$0xff]
      %v265 = vld [vmem:[%s1 + $0x40] sm:$0xff]
      %v266 = vld [vmem:[%s2] sm:$0x1]
      %v268 = vperm.slane %v266, 0
      %vm270 = vcmask 588800
      %v272 = vsel %vm270, %v225, 0
      %v275 = vsel %vm270, %v226, 0
      %v278 = vsel %vm270, %v227, 0
      %v281 = vsel %vm270, %v228, 0
      %v284 = vsel %vm270, %v229, 0
      %v287 = vsel %vm270, %v230, 0
      %v290 = vsel %vm270, %v231, 0
      %v293 = vsel %vm270, %v232, 0
      %v296 = vsel %vm270, %v233, 0
      %v299 = vsel %vm270, %v234, 0
      %v302 = vsel %vm270, %v235, 0
      %v305 = vsel %vm270, %v236, 0
      %v308 = vsel %vm270, %v237, 0
      %v311 = vsel %vm270, %v238, 0
      %v314 = vsel %vm270, %v239, 0
      %v317 = vsel %vm270, %v240, 0
      %v320 = vsel %vm270, %v241, 0
      %v323 = vsel %vm270, %v242, 0
      %v326 = vsel %vm270, %v243, 0
      %v329 = vsel %vm270, %v244, 0
      %v332 = vsel %vm270, %v245, 0
      %v335 = vsel %vm270, %v246, 0
      %v338 = vsel %vm270, %v247, 0
      %v341 = vsel %vm270, %v248, 0
      %v344 = vsel %vm270, %v249, 0
      %v347 = vsel %vm270, %v250, 0
      %v350 = vsel %vm270, %v251, 0
      %v353 = vsel %vm270, %v252, 0
      %v356 = vsel %vm270, %v253, 0
      %v359 = vsel %vm270, %v254, 0
      %v362 = vsel %vm270, %v255, 0
      %v365 = vsel %vm270, %v256, 0
      %367 = vmatpush.msra.mxu0 0.0
      %368 = vmatpush.msra.mxu0 0.0
      %369 = vmatpush.msra.mxu0 0.0
      %370 = vmatpush.msra.mxu0 0.0
      %371 = vmatpush.msra.mxu0 0.0
      %372 = vmatpush.msra.mxu0 0.0
      %373 = vmatpush.msra.mxu0 0.0
      %374 = vmatpush.msra.mxu0 %v265
      %375 = vmatpush.msra.mxu0 %v264
      %376 = vmatpush.msra.mxu0 %v263
      %377 = vmatpush.msra.mxu0 %v262
      %378 = vmatpush.msra.mxu0 %v261
      %379 = vmatpush.msra.mxu0 %v260
      %380 = vmatpush.msra.mxu0 %v259
      %381 = vmatpush.msra.mxu0 %v258
      %382 = vmatpush.msra.mxu0 %v257
      %383 = vmatmul.f32.gmra.mxu0 %v272
      %v384 = vpop.f32.mrf.mxu0
      %v385 = vadd.f32 %v268, %v384
      %386 = vmatmul.f32.gmra.mxu0 %v275
      %v387 = vpop.f32.mrf.mxu0
      %v388 = vadd.f32 %v268, %v387
      %389 = vmatmul.f32.gmra.mxu0 %v278
      %v390 = vpop.f32.mrf.mxu0
      %v391 = vadd.f32 %v268, %v390
      %392 = vmatmul.f32.gmra.mxu0 %v281
      %v393 = vpop.f32.mrf.mxu0
      %v394 = vadd.f32 %v268, %v393
      %395 = vmatmul.f32.gmra.mxu0 %v284
      %v396 = vpop.f32.mrf.mxu0
      %v397 = vadd.f32 %v268, %v396
      %398 = vmatmul.f32.gmra.mxu0 %v287
      %v399 = vpop.f32.mrf.mxu0
      %v400 = vadd.f32 %v268, %v399
      %401 = vmatmul.f32.gmra.mxu0 %v290
      %v402 = vpop.f32.mrf.mxu0
      %v403 = vadd.f32 %v268, %v402
      %404 = vmatmul.f32.gmra.mxu0 %v293
      %v405 = vpop.f32.mrf.mxu0
      %v406 = vadd.f32 %v268, %v405
      %407 = vmatmul.f32.gmra.mxu0 %v296
      %v408 = vpop.f32.mrf.mxu0
      %v409 = vadd.f32 %v268, %v408
      %410 = vmatmul.f32.gmra.mxu0 %v299
      %v411 = vpop.f32.mrf.mxu0
      %v412 = vadd.f32 %v268, %v411
      %413 = vmatmul.f32.gmra.mxu0 %v302
      %v414 = vpop.f32.mrf.mxu0
      %v415 = vadd.f32 %v268, %v414
      %416 = vmatmul.f32.gmra.mxu0 %v305
      %v417 = vpop.f32.mrf.mxu0
      %v418 = vadd.f32 %v268, %v417
      %419 = vmatmul.f32.gmra.mxu0 %v308
      %v420 = vpop.f32.mrf.mxu0
      %v421 = vadd.f32 %v268, %v420
      %422 = vmatmul.f32.gmra.mxu0 %v311
      %v423 = vpop.f32.mrf.mxu0
      %v424 = vadd.f32 %v268, %v423
      %425 = vmatmul.f32.gmra.mxu0 %v314
      %v426 = vpop.f32.mrf.mxu0
      %v427 = vadd.f32 %v268, %v426
      %428 = vmatmul.f32.gmra.mxu0 %v317
      %v429 = vpop.f32.mrf.mxu0
      %v430 = vadd.f32 %v268, %v429
      %431 = vmatmul.f32.gmra.mxu0 %v320
      %v432 = vpop.f32.mrf.mxu0
      %v433 = vadd.f32 %v268, %v432
      %434 = vmatmul.f32.gmra.mxu0 %v323
      %v435 = vpop.f32.mrf.mxu0
      %v436 = vadd.f32 %v268, %v435
      %437 = vmatmul.f32.gmra.mxu0 %v326
      %v438 = vpop.f32.mrf.mxu0
      %v439 = vadd.f32 %v268, %v438
      %440 = vmatmul.f32.gmra.mxu0 %v329
      %v441 = vpop.f32.mrf.mxu0
      %v442 = vadd.f32 %v268, %v441
      %443 = vmatmul.f32.gmra.mxu0 %v332
      %v444 = vpop.f32.mrf.mxu0
      %v445 = vadd.f32 %v268, %v444
      %446 = vmatmul.f32.gmra.mxu0 %v335
      %v447 = vpop.f32.mrf.mxu0
      %v448 = vadd.f32 %v268, %v447
      %449 = vmatmul.f32.gmra.mxu0 %v338
      %v450 = vpop.f32.mrf.mxu0
      %v451 = vadd.f32 %v268, %v450
      %452 = vmatmul.f32.gmra.mxu0 %v341
      %v453 = vpop.f32.mrf.mxu0
      %v454 = vadd.f32 %v268, %v453
      %455 = vmatmul.f32.gmra.mxu0 %v344
      %v456 = vpop.f32.mrf.mxu0
      %v457 = vadd.f32 %v268, %v456
      %458 = vmatmul.f32.gmra.mxu0 %v347
      %v459 = vpop.f32.mrf.mxu0
      %v460 = vadd.f32 %v268, %v459
      %461 = vmatmul.f32.gmra.mxu0 %v350
      %v462 = vpop.f32.mrf.mxu0
      %v463 = vadd.f32 %v268, %v462
      %464 = vmatmul.f32.gmra.mxu0 %v353
      %v465 = vpop.f32.mrf.mxu0
      %v466 = vadd.f32 %v268, %v465
      %467 = vmatmul.f32.gmra.mxu0 %v356
      %v468 = vpop.f32.mrf.mxu0
      %v469 = vadd.f32 %v268, %v468
      %470 = vmatmul.f32.gmra.mxu0 %v359
      %v471 = vpop.f32.mrf.mxu0
      %v472 = vadd.f32 %v268, %v471
      %473 = vmatmul.f32.gmra.mxu0 %v362
      %v474 = vpop.f32.mrf.mxu0
      %v475 = vadd.f32 %v268, %v474
      %476 = vmatmul.f32.gmra.mxu0 %v365
      %v477 = vpop.f32.mrf.mxu0
      %v478 = vadd.f32 %v268, %v477
      %479 = vdwg.mxu0
      %v480 = vmax.f32 %v385, 0.0
      %v481 = vmax.f32 %v388, 0.0
      %v482 = vmax.f32 %v391, 0.0
      %v483 = vmax.f32 %v394, 0.0
      %v484 = vmax.f32 %v397, 0.0
      %v485 = vmax.f32 %v400, 0.0
      %v486 = vmax.f32 %v403, 0.0
      %v487 = vmax.f32 %v406, 0.0
      %v488 = vmax.f32 %v409, 0.0
      %v489 = vmax.f32 %v412, 0.0
      %v490 = vmax.f32 %v415, 0.0
      %v491 = vmax.f32 %v418, 0.0
      %v492 = vmax.f32 %v421, 0.0
      %v493 = vmax.f32 %v424, 0.0
      %v494 = vmax.f32 %v427, 0.0
      %v495 = vmax.f32 %v430, 0.0
      %v496 = vmax.f32 %v433, 0.0
      %v497 = vmax.f32 %v436, 0.0
      %v498 = vmax.f32 %v439, 0.0
      %v499 = vmax.f32 %v442, 0.0
      %v500 = vmax.f32 %v445, 0.0
      %v501 = vmax.f32 %v448, 0.0
      %v502 = vmax.f32 %v451, 0.0
      %v503 = vmax.f32 %v454, 0.0
      %v504 = vmax.f32 %v457, 0.0
      %v505 = vmax.f32 %v460, 0.0
      %v506 = vmax.f32 %v463, 0.0
      %v507 = vmax.f32 %v466, 0.0
      %v508 = vmax.f32 %v469, 0.0
      %v509 = vmax.f32 %v472, 0.0
      %v510 = vmax.f32 %v475, 0.0
      %v511 = vmax.f32 %v478, 0.0
      %vm512 = vcmask 130048
      %513 = vst.msk [vmem:[#allocation2 + $0x7] sm:$0xff] %vm512, 0.0
      %514 = vst.msk [vmem:[#allocation2 + $0xf] sm:$0xff] %vm512, 0.0
      %vm515 = vcmask 123904
      %516 = vst.msk [vmem:[#allocation2 + $0x17] sm:$0x3] %vm515, 0.0
      %s517 = scalar_lea.vmem [#allocation2], 544
      %518 = vst.msk [vmem:[%s517 + $0x7] sm:$0xff] %vm512, 0.0
      %519 = vst.msk [vmem:[%s517 + $0xf] sm:$0xff] %vm512, 0.0
      %520 = vst.msk [vmem:[%s517 + $0x17] sm:$0x3] %vm515, 0.0
      %s521 = scalar_lea.vmem [#allocation2], 32
      %vm522 = vcmask 122880
      %523 = vst.msk [vmem:[%s521 + $0x7] sm:$0x1] %vm522, 0.0
      %524 = vst.msk [vmem:[%s521 + $0x27] sm:$0x1] %vm522, 0.0
      %525 = vst.msk [vmem:[%s521 + $0x47] sm:$0x1] %vm522, 0.0
      %526 = vst.msk [vmem:[%s521 + $0x67] sm:$0x1] %vm522, 0.0
      %527 = vst.msk [vmem:[%s521 + $0x87] sm:$0x1] %vm522, 0.0
      %528 = vst.msk [vmem:[%s521 + $0xa7] sm:$0x1] %vm522, 0.0
      %529 = vst.msk [vmem:[%s521 + $0xc7] sm:$0x1] %vm522, 0.0
      %530 = vst.msk [vmem:[%s521 + $0xe7] sm:$0x1] %vm522, 0.0
      %531 = vst.msk [vmem:[%s521 + $0x107] sm:$0x1] %vm522, 0.0
      %532 = vst.msk [vmem:[%s521 + $0x127] sm:$0x1] %vm522, 0.0
      %533 = vst.msk [vmem:[%s521 + $0x147] sm:$0x1] %vm522, 0.0
      %534 = vst.msk [vmem:[%s521 + $0x167] sm:$0x1] %vm522, 0.0
      %535 = vst.msk [vmem:[%s521 + $0x187] sm:$0x1] %vm522, 0.0
      %536 = vst.msk [vmem:[%s521 + $0x1a7] sm:$0x1] %vm522, 0.0
      %537 = vst.msk [vmem:[%s521 + $0x1c7] sm:$0x1] %vm522, 0.0
      %538 = vst.msk [vmem:[%s521 + $0x1e7] sm:$0x1] %vm522, 0.0
      %539 = vst.msk [vmem:[%s521 + $0x18] sm:$0x1] %vm522, 0.0
      %540 = vst.msk [vmem:[%s521 + $0x38] sm:$0x1] %vm522, 0.0
      %541 = vst.msk [vmem:[%s521 + $0x58] sm:$0x1] %vm522, 0.0
      %542 = vst.msk [vmem:[%s521 + $0x78] sm:$0x1] %vm522, 0.0
      %543 = vst.msk [vmem:[%s521 + $0x98] sm:$0x1] %vm522, 0.0
      %544 = vst.msk [vmem:[%s521 + $0xb8] sm:$0x1] %vm522, 0.0
      %545 = vst.msk [vmem:[%s521 + $0xd8] sm:$0x1] %vm522, 0.0
      %546 = vst.msk [vmem:[%s521 + $0xf8] sm:$0x1] %vm522, 0.0
      %547 = vst.msk [vmem:[%s521 + $0x118] sm:$0x1] %vm522, 0.0
      %548 = vst.msk [vmem:[%s521 + $0x138] sm:$0x1] %vm522, 0.0
      %549 = vst.msk [vmem:[%s521 + $0x158] sm:$0x1] %vm522, 0.0
      %550 = vst.msk [vmem:[%s521 + $0x178] sm:$0x1] %vm522, 0.0
      %551 = vst.msk [vmem:[%s521 + $0x198] sm:$0x1] %vm522, 0.0
      %552 = vst.msk [vmem:[%s521 + $0x1b8] sm:$0x1] %vm522, 0.0
      %553 = vst.msk [vmem:[%s521 + $0x1d8] sm:$0x1] %vm522, 0.0
      %554 = vst.msk [vmem:[%s521 + $0x1f8] sm:$0x1] %vm522, 0.0
      %555 = vst.msk [vmem:[%s521 + $0x8] sm:$0xff] %vm512, %v480
      %556 = vst.msk [vmem:[%s521 + $0x10] sm:$0xff] %vm512, %v481
      %557 = vst.msk [vmem:[%s521 + $0x28] sm:$0xff] %vm512, %v482
      %558 = vst.msk [vmem:[%s521 + $0x30] sm:$0xff] %vm512, %v483
      %559 = vst.msk [vmem:[%s521 + $0x48] sm:$0xff] %vm512, %v484
      %560 = vst.msk [vmem:[%s521 + $0x50] sm:$0xff] %vm512, %v485
      %561 = vst.msk [vmem:[%s521 + $0x68] sm:$0xff] %vm512, %v486
      %562 = vst.msk [vmem:[%s521 + $0x70] sm:$0xff] %vm512, %v487
      %563 = vst.msk [vmem:[%s521 + $0x88] sm:$0xff] %vm512, %v488
      %564 = vst.msk [vmem:[%s521 + $0x90] sm:$0xff] %vm512, %v489
      %565 = vst.msk [vmem:[%s521 + $0xa8] sm:$0xff] %vm512, %v490
      %566 = vst.msk [vmem:[%s521 + $0xb0] sm:$0xff] %vm512, %v491
      %567 = vst.msk [vmem:[%s521 + $0xc8] sm:$0xff] %vm512, %v492
      %568 = vst.msk [vmem:[%s521 + $0xd0] sm:$0xff] %vm512, %v493
      %569 = vst.msk [vmem:[%s521 + $0xe8] sm:$0xff] %vm512, %v494
      %570 = vst.msk [vmem:[%s521 + $0xf0] sm:$0xff] %vm512, %v495
      %571 = vst.msk [vmem:[%s521 + $0x108] sm:$0xff] %vm512, %v496
      %572 = vst.msk [vmem:[%s521 + $0x110] sm:$0xff] %vm512, %v497
      %573 = vst.msk [vmem:[%s521 + $0x128] sm:$0xff] %vm512, %v498
      %574 = vst.msk [vmem:[%s521 + $0x130] sm:$0xff] %vm512, %v499
      %575 = vst.msk [vmem:[%s521 + $0x148] sm:$0xff] %vm512, %v500
      %576 = vst.msk [vmem:[%s521 + $0x150] sm:$0xff] %vm512, %v501
      %577 = vst.msk [vmem:[%s521 + $0x168] sm:$0xff] %vm512, %v502
      %578 = vst.msk [vmem:[%s521 + $0x170] sm:$0xff] %vm512, %v503
      %579 = vst.msk [vmem:[%s521 + $0x188] sm:$0xff] %vm512, %v504
      %580 = vst.msk [vmem:[%s521 + $0x190] sm:$0xff] %vm512, %v505
      %581 = vst.msk [vmem:[%s521 + $0x1a8] sm:$0xff] %vm512, %v506
      %582 = vst.msk [vmem:[%s521 + $0x1b0] sm:$0xff] %vm512, %v507
      %583 = vst.msk [vmem:[%s521 + $0x1c8] sm:$0xff] %vm512, %v508
      %584 = vst.msk [vmem:[%s521 + $0x1d0] sm:$0xff] %vm512, %v509
      %585 = vst.msk [vmem:[%s521 + $0x1e8] sm:$0xff] %vm512, %v510
      %586 = vst.msk [vmem:[%s521 + $0x1f0] sm:$0xff] %vm512, %v511
      %v587 = vld [vmem:[#allocation2 + $0x7] sm:$0xff]
      %v588 = vld [vmem:[#allocation2 + $0xf] sm:$0xff]
      %v589 = vld [vmem:[#allocation2 + $0x27] sm:$0xff]
      %v590 = vld [vmem:[#allocation2 + $0x2f] sm:$0xff]
      %v591 = vld [vmem:[#allocation2 + $0x47] sm:$0xff]
      %v592 = vld [vmem:[#allocation2 + $0x4f] sm:$0xff]
      %v593 = vld [vmem:[#allocation2 + $0x67] sm:$0xff]
      %v594 = vld [vmem:[#allocation2 + $0x6f] sm:$0xff]
      %v595 = vld [vmem:[#allocation2 + $0x87] sm:$0xff]
      %v596 = vld [vmem:[#allocation2 + $0x8f] sm:$0xff]
      %v597 = vld [vmem:[#allocation2 + $0xa7] sm:$0xff]
      %v598 = vld [vmem:[#allocation2 + $0xaf] sm:$0xff]
      %v599 = vld [vmem:[#allocation2 + $0xc7] sm:$0xff]
      %v600 = vld [vmem:[#allocation2 + $0xcf] sm:$0xff]
      %v601 = vld [vmem:[#allocation2 + $0xe7] sm:$0xff]
      %v602 = vld [vmem:[#allocation2 + $0xef] sm:$0xff]
      %v603 = vld [vmem:[#allocation2 + $0x107] sm:$0xff]
      %v604 = vld [vmem:[#allocation2 + $0x10f] sm:$0xff]
      %v605 = vld [vmem:[#allocation2 + $0x127] sm:$0xff]
      %v606 = vld [vmem:[#allocation2 + $0x12f] sm:$0xff]
      %v607 = vld [vmem:[#allocation2 + $0x147] sm:$0xff]
      %v608 = vld [vmem:[#allocation2 + $0x14f] sm:$0xff]
      %v609 = vld [vmem:[#allocation2 + $0x167] sm:$0xff]
      %v610 = vld [vmem:[#allocation2 + $0x16f] sm:$0xff]
      %v611 = vld [vmem:[#allocation2 + $0x187] sm:$0xff]
      %v612 = vld [vmem:[#allocation2 + $0x18f] sm:$0xff]
      %v613 = vld [vmem:[#allocation2 + $0x1a7] sm:$0xff]
      %v614 = vld [vmem:[#allocation2 + $0x1af] sm:$0xff]
      %v615 = vld [vmem:[#allocation2 + $0x1c7] sm:$0xff]
      %v616 = vld [vmem:[#allocation2 + $0x1cf] sm:$0xff]
      %v617 = vld [vmem:[#allocation2 + $0x1e7] sm:$0xff]
      %v618 = vld [vmem:[#allocation2 + $0x1ef] sm:$0xff]
      %v619 = vld [vmem:[%s3] sm:$0xff]
      %v620 = vld [vmem:[%s3 + $0x8] sm:$0xff]
      %v621 = vld [vmem:[#allocation2 + $0x8] sm:$0xff]
      %v622 = vld [vmem:[#allocation2 + $0x10] sm:$0xff]
      %v623 = vld [vmem:[#allocation2 + $0x28] sm:$0xff]
      %v624 = vld [vmem:[#allocation2 + $0x30] sm:$0xff]
      %v625 = vld [vmem:[#allocation2 + $0x48] sm:$0xff]
      %v626 = vld [vmem:[#allocation2 + $0x50] sm:$0xff]
      %v627 = vld [vmem:[#allocation2 + $0x68] sm:$0xff]
      %v628 = vld [vmem:[#allocation2 + $0x70] sm:$0xff]
      %v629 = vld [vmem:[#allocation2 + $0x88] sm:$0xff]
      %v630 = vld [vmem:[#allocation2 + $0x90] sm:$0xff]
      %v631 = vld [vmem:[#allocation2 + $0xa8] sm:$0xff]
      %v632 = vld [vmem:[#allocation2 + $0xb0] sm:$0xff]
      %v633 = vld [vmem:[#allocation2 + $0xc8] sm:$0xff]
      %v634 = vld [vmem:[#allocation2 + $0xd0] sm:$0xff]
      %v635 = vld [vmem:[#allocation2 + $0xe8] sm:$0xff]
      %v636 = vld [vmem:[#allocation2 + $0xf0] sm:$0xff]
      %v637 = vld [vmem:[#allocation2 + $0x108] sm:$0xff]
      %v638 = vld [vmem:[#allocation2 + $0x110] sm:$0xff]
      %v639 = vld [vmem:[#allocation2 + $0x128] sm:$0xff]
      %v640 = vld [vmem:[#allocation2 + $0x130] sm:$0xff]
      %v641 = vld [vmem:[#allocation2 + $0x148] sm:$0xff]
      %v642 = vld [vmem:[#allocation2 + $0x150] sm:$0xff]
      %v643 = vld [vmem:[#allocation2 + $0x168] sm:$0xff]
      %v644 = vld [vmem:[#allocation2 + $0x170] sm:$0xff]
      %v645 = vld [vmem:[#allocation2 + $0x188] sm:$0xff]
      %v646 = vld [vmem:[#allocation2 + $0x190] sm:$0xff]
      %v647 = vld [vmem:[#allocation2 + $0x1a8] sm:$0xff]
      %v648 = vld [vmem:[#allocation2 + $0x1b0] sm:$0xff]
      %v649 = vld [vmem:[#allocation2 + $0x1c8] sm:$0xff]
      %v650 = vld [vmem:[#allocation2 + $0x1d0] sm:$0xff]
      %v651 = vld [vmem:[#allocation2 + $0x1e8] sm:$0xff]
      %v652 = vld [vmem:[#allocation2 + $0x1f0] sm:$0xff]
      %s653 = scalar_lea.vmem %s3, 16
      %v654 = vld [vmem:[%s653] sm:$0xff]
      %v655 = vld [vmem:[%s653 + $0x8] sm:$0xff]
      %v657 = vsel %vm512, %v654, 0
      %v660 = vsel %vm512, %v655, 0
      %v663 = vsel %vm512, %v621, 0
      %v666 = vsel %vm512, %v622, 0
      %v669 = vsel %vm512, %v623, 0
      %v672 = vsel %vm512, %v624, 0
      %v675 = vsel %vm512, %v625, 0
      %v678 = vsel %vm512, %v626, 0
      %v681 = vsel %vm512, %v627, 0
      %v684 = vsel %vm512, %v628, 0
      %v687 = vsel %vm512, %v629, 0
      %v690 = vsel %vm512, %v630, 0
      %v693 = vsel %vm512, %v631, 0
      %v696 = vsel %vm512, %v632, 0
      %v699 = vsel %vm512, %v633, 0
      %v702 = vsel %vm512, %v634, 0
      %v705 = vsel %vm512, %v635, 0
      %v708 = vsel %vm512, %v636, 0
      %v711 = vsel %vm512, %v637, 0
      %v714 = vsel %vm512, %v638, 0
      %v717 = vsel %vm512, %v639, 0
      %v720 = vsel %vm512, %v640, 0
      %v723 = vsel %vm512, %v641, 0
      %v726 = vsel %vm512, %v642, 0
      %v729 = vsel %vm512, %v643, 0
      %v732 = vsel %vm512, %v644, 0
      %v735 = vsel %vm512, %v645, 0
      %v738 = vsel %vm512, %v646, 0
      %v741 = vsel %vm512, %v647, 0
      %v744 = vsel %vm512, %v648, 0
      %v747 = vsel %vm512, %v649, 0
      %v750 = vsel %vm512, %v650, 0
      %v753 = vsel %vm512, %v651, 0
      %v756 = vsel %vm512, %v652, 0
      %758 = vmatpush.xpose.msra.mxu0 %v708
      %759 = vmatpush.xpose.msra.mxu0 %v705
      %760 = vmatpush.xpose.msra.mxu0 %v702
      %761 = vmatpush.xpose.msra.mxu0 %v699
      %762 = vmatpush.xpose.msra.mxu0 %v696
      %763 = vmatpush.xpose.msra.mxu0 %v693
      %764 = vmatpush.xpose.msra.mxu0 %v690
      %765 = vmatpush.xpose.msra.mxu0 %v687
      %766 = vmatpush.xpose.msra.mxu0 %v684
      %767 = vmatpush.xpose.msra.mxu0 %v681
      %768 = vmatpush.xpose.msra.mxu0 %v678
      %769 = vmatpush.xpose.msra.mxu0 %v675
      %770 = vmatpush.xpose.msra.mxu0 %v672
      %771 = vmatpush.xpose.msra.mxu0 %v669
      %772 = vmatpush.xpose.msra.mxu0 %v666
      %773 = vmatpush.xpose.msra.mxu0 %v663
      %774 = vmatmul.f32.gmra.mxu0 %v657
      %v775 = vpop.f32.mrf.mxu0
      %v776 = vadd.f32 0.0, %v775
      %777 = vmatmul.f32.gmra.mxu0 %v660
      %v778 = vpop.f32.mrf.mxu0
      %v779 = vadd.f32 0.0, %v778
      %780 = vdwg.mxu0
      %781 = vmatpush.xpose.msra.mxu0 %v756
      %782 = vmatpush.xpose.msra.mxu0 %v753
      %783 = vmatpush.xpose.msra.mxu0 %v750
      %784 = vmatpush.xpose.msra.mxu0 %v747
      %785 = vmatpush.xpose.msra.mxu0 %v744
      %786 = vmatpush.xpose.msra.mxu0 %v741
      %787 = vmatpush.xpose.msra.mxu0 %v738
      %788 = vmatpush.xpose.msra.mxu0 %v735
      %789 = vmatpush.xpose.msra.mxu0 %v732
      %790 = vmatpush.xpose.msra.mxu0 %v729
      %791 = vmatpush.xpose.msra.mxu0 %v726
      %792 = vmatpush.xpose.msra.mxu0 %v723
      %793 = vmatpush.xpose.msra.mxu0 %v720
      %794 = vmatpush.xpose.msra.mxu0 %v717
      %795 = vmatpush.xpose.msra.mxu0 %v714
      %796 = vmatpush.xpose.msra.mxu0 %v711
      %797 = vmatmul.f32.gmra.mxu0 %v657
      %v798 = vpop.f32.mrf.mxu0
      %v799 = vadd.f32 0.0, %v798
      %800 = vmatmul.f32.gmra.mxu0 %v660
      %v801 = vpop.f32.mrf.mxu0
      %v802 = vadd.f32 0.0, %v801
      %803 = vdwg.mxu0
      %v805 = vsel %vm512, %v619, 0
      %v808 = vsel %vm512, %v620, 0
      %v811 = vsel %vm512, %v587, 0
      %v814 = vsel %vm512, %v588, 0
      %v817 = vsel %vm512, %v589, 0
      %v820 = vsel %vm512, %v590, 0
      %v823 = vsel %vm512, %v591, 0
      %v826 = vsel %vm512, %v592, 0
      %v829 = vsel %vm512, %v593, 0
      %v832 = vsel %vm512, %v594, 0
      %v835 = vsel %vm512, %v595, 0
      %v838 = vsel %vm512, %v596, 0
      %v841 = vsel %vm512, %v597, 0
      %v844 = vsel %vm512, %v598, 0
      %v847 = vsel %vm512, %v599, 0
      %v850 = vsel %vm512, %v600, 0
      %v853 = vsel %vm512, %v601, 0
      %v856 = vsel %vm512, %v602, 0
      %v859 = vsel %vm512, %v603, 0
      %v862 = vsel %vm512, %v604, 0
      %v865 = vsel %vm512, %v605, 0
      %v868 = vsel %vm512, %v606, 0
      %v871 = vsel %vm512, %v607, 0
      %v874 = vsel %vm512, %v608, 0
      %v877 = vsel %vm512, %v609, 0
      %v880 = vsel %vm512, %v610, 0
      %v883 = vsel %vm512, %v611, 0
      %v886 = vsel %vm512, %v612, 0
      %v889 = vsel %vm512, %v613, 0
      %v892 = vsel %vm512, %v614, 0
      %v895 = vsel %vm512, %v615, 0
      %v898 = vsel %vm512, %v616, 0
      %v901 = vsel %vm512, %v617, 0
      %v904 = vsel %vm512, %v618, 0
      %906 = vmatpush.xpose.msra.mxu0 %v856
      %907 = vmatpush.xpose.msra.mxu0 %v853
      %908 = vmatpush.xpose.msra.mxu0 %v850
      %909 = vmatpush.xpose.msra.mxu0 %v847
      %910 = vmatpush.xpose.msra.mxu0 %v844
      %911 = vmatpush.xpose.msra.mxu0 %v841
      %912 = vmatpush.xpose.msra.mxu0 %v838
      %913 = vmatpush.xpose.msra.mxu0 %v835
      %914 = vmatpush.xpose.msra.mxu0 %v832
      %915 = vmatpush.xpose.msra.mxu0 %v829
      %916 = vmatpush.xpose.msra.mxu0 %v826
      %917 = vmatpush.xpose.msra.mxu0 %v823
      %918 = vmatpush.xpose.msra.mxu0 %v820
      %919 = vmatpush.xpose.msra.mxu0 %v817
      %920 = vmatpush.xpose.msra.mxu0 %v814
      %921 = vmatpush.xpose.msra.mxu0 %v811
      %922 = vmatmul.f32.gmra.mxu0 %v805
      %v923 = vpop.f32.mrf.mxu0
      %v924 = vadd.f32 %v776, %v923
      %925 = vmatmul.f32.gmra.mxu0 %v808
      %v926 = vpop.f32.mrf.mxu0
      %v927 = vadd.f32 %v779, %v926
      %928 = vdwg.mxu0
      %929 = vmatpush.xpose.msra.mxu0 %v904
      %930 = vmatpush.xpose.msra.mxu0 %v901
      %931 = vmatpush.xpose.msra.mxu0 %v898
      %932 = vmatpush.xpose.msra.mxu0 %v895
      %933 = vmatpush.xpose.msra.mxu0 %v892
      %934 = vmatpush.xpose.msra.mxu0 %v889
      %935 = vmatpush.xpose.msra.mxu0 %v886
      %936 = vmatpush.xpose.msra.mxu0 %v883
      %937 = vmatpush.xpose.msra.mxu0 %v880
      %938 = vmatpush.xpose.msra.mxu0 %v877
      %939 = vmatpush.xpose.msra.mxu0 %v874
      %940 = vmatpush.xpose.msra.mxu0 %v871
      %941 = vmatpush.xpose.msra.mxu0 %v868
      %942 = vmatpush.xpose.msra.mxu0 %v865
      %943 = vmatpush.xpose.msra.mxu0 %v862
      %944 = vmatpush.xpose.msra.mxu0 %v859
      %945 = vmatmul.f32.gmra.mxu0 %v805
      %v946 = vpop.f32.mrf.mxu0
      %v947 = vadd.f32 %v799, %v946
      %948 = vmatmul.f32.gmra.mxu0 %v808
      %v949 = vpop.f32.mrf.mxu0
      %v950 = vadd.f32 %v802, %v949
      %951 = vdwg.mxu0
      %v952 = vld [vmem:[#allocation2 + $0x9] sm:$0xff]
      %v953 = vld [vmem:[#allocation2 + $0x11] sm:$0xff]
      %v954 = vld [vmem:[#allocation2 + $0x29] sm:$0xff]
      %v955 = vld [vmem:[#allocation2 + $0x31] sm:$0xff]
      %v956 = vld [vmem:[#allocation2 + $0x49] sm:$0xff]
      %v957 = vld [vmem:[#allocation2 + $0x51] sm:$0xff]
      %v958 = vld [vmem:[#allocation2 + $0x69] sm:$0xff]
      %v959 = vld [vmem:[#allocation2 + $0x71] sm:$0xff]
      %v960 = vld [vmem:[#allocation2 + $0x89] sm:$0xff]
      %v961 = vld [vmem:[#allocation2 + $0x91] sm:$0xff]
      %v962 = vld [vmem:[#allocation2 + $0xa9] sm:$0xff]
      %v963 = vld [vmem:[#allocation2 + $0xb1] sm:$0xff]
      %v964 = vld [vmem:[#allocation2 + $0xc9] sm:$0xff]
      %v965 = vld [vmem:[#allocation2 + $0xd1] sm:$0xff]
      %v966 = vld [vmem:[#allocation2 + $0xe9] sm:$0xff]
      %v967 = vld [vmem:[#allocation2 + $0xf1] sm:$0xff]
      %v968 = vld [vmem:[#allocation2 + $0x109] sm:$0xff]
      %v969 = vld [vmem:[#allocation2 + $0x111] sm:$0xff]
      %v970 = vld [vmem:[#allocation2 + $0x129] sm:$0xff]
      %v971 = vld [vmem:[#allocation2 + $0x131] sm:$0xff]
      %v972 = vld [vmem:[#allocation2 + $0x149] sm:$0xff]
      %v973 = vld [vmem:[#allocation2 + $0x151] sm:$0xff]
      %v974 = vld [vmem:[#allocation2 + $0x169] sm:$0xff]
      %v975 = vld [vmem:[#allocation2 + $0x171] sm:$0xff]
      %v976 = vld [vmem:[#allocation2 + $0x189] sm:$0xff]
      %v977 = vld [vmem:[#allocation2 + $0x191] sm:$0xff]
      %v978 = vld [vmem:[#allocation2 + $0x1a9] sm:$0xff]
      %v979 = vld [vmem:[#allocation2 + $0x1b1] sm:$0xff]
      %v980 = vld [vmem:[#allocation2 + $0x1c9] sm:$0xff]
      %v981 = vld [vmem:[#allocation2 + $0x1d1] sm:$0xff]
      %v982 = vld [vmem:[#allocation2 + $0x1e9] sm:$0xff]
      %v983 = vld [vmem:[#allocation2 + $0x1f1] sm:$0xff]
      %s984 = scalar_lea.vmem %s3, 32
      %v985 = vld [vmem:[%s984] sm:$0xff]
      %v986 = vld [vmem:[%s984 + $0x8] sm:$0xff]
      %v988 = vsel %vm512, %v985, 0
      %v991 = vsel %vm512, %v986, 0
      %v994 = vsel %vm512, %v952, 0
      %v997 = vsel %vm512, %v953, 0
      %v1000 = vsel %vm512, %v954, 0
      %v1003 = vsel %vm512, %v955, 0
      %v1006 = vsel %vm512, %v956, 0
      %v1009 = vsel %vm512, %v957, 0
      %v1012 = vsel %vm512, %v958, 0
      %v1015 = vsel %vm512, %v959, 0
      %v1018 = vsel %vm512, %v960, 0
      %v1021 = vsel %vm512, %v961, 0
      %v1024 = vsel %vm512, %v962, 0
      %v1027 = vsel %vm512, %v963, 0
      %v1030 = vsel %vm512, %v964, 0
      %v1033 = vsel %vm512, %v965, 0
      %v1036 = vsel %vm512, %v966, 0
      %v1039 = vsel %vm512, %v967, 0
      %v1042 = vsel %vm512, %v968, 0
      %v1045 = vsel %vm512, %v969, 0
      %v1048 = vsel %vm512, %v970, 0
      %v1051 = vsel %vm512, %v971, 0
      %v1054 = vsel %vm512, %v972, 0
      %v1057 = vsel %vm512, %v973, 0
      %v1060 = vsel %vm512, %v974, 0
      %v1063 = vsel %vm512, %v975, 0
      %v1066 = vsel %vm512, %v976, 0
      %v1069 = vsel %vm512, %v977, 0
      %v1072 = vsel %vm512, %v978, 0
      %v1075 = vsel %vm512, %v979, 0
      %v1078 = vsel %vm512, %v980, 0
      %v1081 = vsel %vm512, %v981, 0
      %v1084 = vsel %vm512, %v982, 0
      %v1087 = vsel %vm512, %v983, 0
      %1089 = vmatpush.xpose.msra.mxu0 %v1039
      %1090 = vmatpush.xpose.msra.mxu0 %v1036
      %1091 = vmatpush.xpose.msra.mxu0 %v1033
      %1092 = vmatpush.xpose.msra.mxu0 %v1030
      %1093 = vmatpush.xpose.msra.mxu0 %v1027
      %1094 = vmatpush.xpose.msra.mxu0 %v1024
      %1095 = vmatpush.xpose.msra.mxu0 %v1021
      %1096 = vmatpush.xpose.msra.mxu0 %v1018
      %1097 = vmatpush.xpose.msra.mxu0 %v1015
      %1098 = vmatpush.xpose.msra.mxu0 %v1012
      %1099 = vmatpush.xpose.msra.mxu0 %v1009
      %1100 = vmatpush.xpose.msra.mxu0 %v1006
      %1101 = vmatpush.xpose.msra.mxu0 %v1003
      %1102 = vmatpush.xpose.msra.mxu0 %v1000
      %1103 = vmatpush.xpose.msra.mxu0 %v997
      %1104 = vmatpush.xpose.msra.mxu0 %v994
      %1105 = vmatmul.f32.gmra.mxu0 %v988
      %v1106 = vpop.f32.mrf.mxu0
      %v1107 = vadd.f32 0.0, %v1106
      %1108 = vmatmul.f32.gmra.mxu0 %v991
      %v1109 = vpop.f32.mrf.mxu0
      %v1110 = vadd.f32 0.0, %v1109
      %1111 = vdwg.mxu0
      %1112 = vmatpush.xpose.msra.mxu0 %v1087
      %1113 = vmatpush.xpose.msra.mxu0 %v1084
      %1114 = vmatpush.xpose.msra.mxu0 %v1081
      %1115 = vmatpush.xpose.msra.mxu0 %v1078
      %1116 = vmatpush.xpose.msra.mxu0 %v1075
      %1117 = vmatpush.xpose.msra.mxu0 %v1072
      %1118 = vmatpush.xpose.msra.mxu0 %v1069
      %1119 = vmatpush.xpose.msra.mxu0 %v1066
      %1120 = vmatpush.xpose.msra.mxu0 %v1063
      %1121 = vmatpush.xpose.msra.mxu0 %v1060
      %1122 = vmatpush.xpose.msra.mxu0 %v1057
      %1123 = vmatpush.xpose.msra.mxu0 %v1054
      %1124 = vmatpush.xpose.msra.mxu0 %v1051
      %1125 = vmatpush.xpose.msra.mxu0 %v1048
      %1126 = vmatpush.xpose.msra.mxu0 %v1045
      %1127 = vmatpush.xpose.msra.mxu0 %v1042
      %1128 = vmatmul.f32.gmra.mxu0 %v988
      %v1129 = vpop.f32.mrf.mxu0
      %v1130 = vadd.f32 0.0, %v1129
      %1131 = vmatmul.f32.gmra.mxu0 %v991
      %v1132 = vpop.f32.mrf.mxu0
      %v1133 = vadd.f32 0.0, %v1132
      %1134 = vdwg.mxu0
      %v1135 = vadd.f32 %v924, %v1107
      %v1136 = vadd.f32 %v947, %v1130
      %v1137 = vadd.f32 %v927, %v1110
      %v1138 = vadd.f32 %v950, %v1133
      %v1139 = vld [vmem:[%s521 + $0x7] sm:$0xff]
      %v1140 = vld [vmem:[%s521 + $0xf] sm:$0xff]
      %v1141 = vld [vmem:[%s521 + $0x27] sm:$0xff]
      %v1142 = vld [vmem:[%s521 + $0x2f] sm:$0xff]
      %v1143 = vld [vmem:[%s521 + $0x47] sm:$0xff]
      %v1144 = vld [vmem:[%s521 + $0x4f] sm:$0xff]
      %v1145 = vld [vmem:[%s521 + $0x67] sm:$0xff]
      %v1146 = vld [vmem:[%s521 + $0x6f] sm:$0xff]
      %v1147 = vld [vmem:[%s521 + $0x87] sm:$0xff]
      %v1148 = vld [vmem:[%s521 + $0x8f] sm:$0xff]
      %v1149 = vld [vmem:[%s521 + $0xa7] sm:$0xff]
      %v1150 = vld [vmem:[%s521 + $0xaf] sm:$0xff]
      %v1151 = vld [vmem:[%s521 + $0xc7] sm:$0xff]
      %v1152 = vld [vmem:[%s521 + $0xcf] sm:$0xff]
      %v1153 = vld [vmem:[%s521 + $0xe7] sm:$0xff]
      %v1154 = vld [vmem:[%s521 + $0xef] sm:$0xff]
      %v1155 = vld [vmem:[%s521 + $0x107] sm:$0xff]
      %v1156 = vld [vmem:[%s521 + $0x10f] sm:$0xff]
      %v1157 = vld [vmem:[%s521 + $0x127] sm:$0xff]
      %v1158 = vld [vmem:[%s521 + $0x12f] sm:$0xff]
      %v1159 = vld [vmem:[%s521 + $0x147] sm:$0xff]
      %v1160 = vld [vmem:[%s521 + $0x14f] sm:$0xff]
      %v1161 = vld [vmem:[%s521 + $0x167] sm:$0xff]
      %v1162 = vld [vmem:[%s521 + $0x16f] sm:$0xff]
      %v1163 = vld [vmem:[%s521 + $0x187] sm:$0xff]
      %v1164 = vld [vmem:[%s521 + $0x18f] sm:$0xff]
      %v1165 = vld [vmem:[%s521 + $0x1a7] sm:$0xff]
      %v1166 = vld [vmem:[%s521 + $0x1af] sm:$0xff]
      %v1167 = vld [vmem:[%s521 + $0x1c7] sm:$0xff]
      %v1168 = vld [vmem:[%s521 + $0x1cf] sm:$0xff]
      %v1169 = vld [vmem:[%s521 + $0x1e7] sm:$0xff]
      %v1170 = vld [vmem:[%s521 + $0x1ef] sm:$0xff]
      %s1171 = scalar_lea.vmem %s3, 48
      %v1172 = vld [vmem:[%s1171] sm:$0xff]
      %v1173 = vld [vmem:[%s1171 + $0x8] sm:$0xff]
      %v1175 = vsel %vm512, %v1172, 0
      %v1178 = vsel %vm512, %v1173, 0
      %v1181 = vsel %vm512, %v1139, 0
      %v1184 = vsel %vm512, %v1140, 0
      %v1187 = vsel %vm512, %v1141, 0
      %v1190 = vsel %vm512, %v1142, 0
      %v1193 = vsel %vm512, %v1143, 0
      %v1196 = vsel %vm512, %v1144, 0
      %v1199 = vsel %vm512, %v1145, 0
      %v1202 = vsel %vm512, %v1146, 0
      %v1205 = vsel %vm512, %v1147, 0
      %v1208 = vsel %vm512, %v1148, 0
      %v1211 = vsel %vm512, %v1149, 0
      %v1214 = vsel %vm512, %v1150, 0
      %v1217 = vsel %vm512, %v1151, 0
      %v1220 = vsel %vm512, %v1152, 0
      %v1223 = vsel %vm512, %v1153, 0
      %v1226 = vsel %vm512, %v1154, 0
      %v1229 = vsel %vm512, %v1155, 0
      %v1232 = vsel %vm512, %v1156, 0
      %v1235 = vsel %vm512, %v1157, 0
      %v1238 = vsel %vm512, %v1158, 0
      %v1241 = vsel %vm512, %v1159, 0
      %v1244 = vsel %vm512, %v1160, 0
      %v1247 = vsel %vm512, %v1161, 0
      %v1250 = vsel %vm512, %v1162, 0
      %v1253 = vsel %vm512, %v1163, 0
      %v1256 = vsel %vm512, %v1164, 0
      %v1259 = vsel %vm512, %v1165, 0
      %v1262 = vsel %vm512, %v1166, 0
      %v1265 = vsel %vm512, %v1167, 0
      %v1268 = vsel %vm512, %v1168, 0
      %v1271 = vsel %vm512, %v1169, 0
      %v1274 = vsel %vm512, %v1170, 0
      %1276 = vmatpush.xpose.msra.mxu0 %v1226
      %1277 = vmatpush.xpose.msra.mxu0 %v1223
      %1278 = vmatpush.xpose.msra.mxu0 %v1220
      %1279 = vmatpush.xpose.msra.mxu0 %v1217
      %1280 = vmatpush.xpose.msra.mxu0 %v1214
      %1281 = vmatpush.xpose.msra.mxu0 %v1211
      %1282 = vmatpush.xpose.msra.mxu0 %v1208
      %1283 = vmatpush.xpose.msra.mxu0 %v1205
      %1284 = vmatpush.xpose.msra.mxu0 %v1202
      %1285 = vmatpush.xpose.msra.mxu0 %v1199
      %1286 = vmatpush.xpose.msra.mxu0 %v1196
      %1287 = vmatpush.xpose.msra.mxu0 %v1193
      %1288 = vmatpush.xpose.msra.mxu0 %v1190
      %1289 = vmatpush.xpose.msra.mxu0 %v1187
      %1290 = vmatpush.xpose.msra.mxu0 %v1184
      %1291 = vmatpush.xpose.msra.mxu0 %v1181
      %1292 = vmatmul.f32.gmra.mxu0 %v1175
      %v1293 = vpop.f32.mrf.mxu0
      %v1294 = vadd.f32 0.0, %v1293
      %1295 = vmatmul.f32.gmra.mxu0 %v1178
      %v1296 = vpop.f32.mrf.mxu0
      %v1297 = vadd.f32 0.0, %v1296
      %1298 = vdwg.mxu0
      %1299 = vmatpush.xpose.msra.mxu0 %v1274
      %1300 = vmatpush.xpose.msra.mxu0 %v1271
      %1301 = vmatpush.xpose.msra.mxu0 %v1268
      %1302 = vmatpush.xpose.msra.mxu0 %v1265
      %1303 = vmatpush.xpose.msra.mxu0 %v1262
      %1304 = vmatpush.xpose.msra.mxu0 %v1259
      %1305 = vmatpush.xpose.msra.mxu0 %v1256
      %1306 = vmatpush.xpose.msra.mxu0 %v1253
      %1307 = vmatpush.xpose.msra.mxu0 %v1250
      %1308 = vmatpush.xpose.msra.mxu0 %v1247
      %1309 = vmatpush.xpose.msra.mxu0 %v1244
      %1310 = vmatpush.xpose.msra.mxu0 %v1241
      %1311 = vmatpush.xpose.msra.mxu0 %v1238
      %1312 = vmatpush.xpose.msra.mxu0 %v1235
      %1313 = vmatpush.xpose.msra.mxu0 %v1232
      %1314 = vmatpush.xpose.msra.mxu0 %v1229
      %1315 = vmatmul.f32.gmra.mxu0 %v1175
      %v1316 = vpop.f32.mrf.mxu0
      %v1317 = vadd.f32 0.0, %v1316
      %1318 = vmatmul.f32.gmra.mxu0 %v1178
      %v1319 = vpop.f32.mrf.mxu0
      %v1320 = vadd.f32 0.0, %v1319
      %1321 = vdwg.mxu0
      %v1322 = vadd.f32 %v1135, %v1294
      %v1323 = vadd.f32 %v1136, %v1317
      %v1324 = vadd.f32 %v1137, %v1297
      %v1325 = vadd.f32 %v1138, %v1320
      %v1326 = vld [vmem:[%s521 + $0x8] sm:$0xff]
      %v1327 = vld [vmem:[%s521 + $0x10] sm:$0xff]
      %v1328 = vld [vmem:[%s521 + $0x28] sm:$0xff]
      %v1329 = vld [vmem:[%s521 + $0x30] sm:$0xff]
      %v1330 = vld [vmem:[%s521 + $0x48] sm:$0xff]
      %v1331 = vld [vmem:[%s521 + $0x50] sm:$0xff]
      %v1332 = vld [vmem:[%s521 + $0x68] sm:$0xff]
      %v1333 = vld [vmem:[%s521 + $0x70] sm:$0xff]
      %v1334 = vld [vmem:[%s521 + $0x88] sm:$0xff]
      %v1335 = vld [vmem:[%s521 + $0x90] sm:$0xff]
      %v1336 = vld [vmem:[%s521 + $0xa8] sm:$0xff]
      %v1337 = vld [vmem:[%s521 + $0xb0] sm:$0xff]
      %v1338 = vld [vmem:[%s521 + $0xc8] sm:$0xff]
      %v1339 = vld [vmem:[%s521 + $0xd0] sm:$0xff]
      %v1340 = vld [vmem:[%s521 + $0xe8] sm:$0xff]
      %v1341 = vld [vmem:[%s521 + $0xf0] sm:$0xff]
      %v1342 = vld [vmem:[%s521 + $0x108] sm:$0xff]
      %v1343 = vld [vmem:[%s521 + $0x110] sm:$0xff]
      %v1344 = vld [vmem:[%s521 + $0x128] sm:$0xff]
      %v1345 = vld [vmem:[%s521 + $0x130] sm:$0xff]
      %v1346 = vld [vmem:[%s521 + $0x148] sm:$0xff]
      %v1347 = vld [vmem:[%s521 + $0x150] sm:$0xff]
      %v1348 = vld [vmem:[%s521 + $0x168] sm:$0xff]
      %v1349 = vld [vmem:[%s521 + $0x170] sm:$0xff]
      %v1350 = vld [vmem:[%s521 + $0x188] sm:$0xff]
      %v1351 = vld [vmem:[%s521 + $0x190] sm:$0xff]
      %v1352 = vld [vmem:[%s521 + $0x1a8] sm:$0xff]
      %v1353 = vld [vmem:[%s521 + $0x1b0] sm:$0xff]
      %v1354 = vld [vmem:[%s521 + $0x1c8] sm:$0xff]
      %v1355 = vld [vmem:[%s521 + $0x1d0] sm:$0xff]
      %v1356 = vld [vmem:[%s521 + $0x1e8] sm:$0xff]
      %v1357 = vld [vmem:[%s521 + $0x1f0] sm:$0xff]
      %s1358 = scalar_lea.vmem %s3, 64
      %v1359 = vld [vmem:[%s1358] sm:$0xff]
      %v1360 = vld [vmem:[%s1358 + $0x8] sm:$0xff]
      %v1362 = vsel %vm512, %v1359, 0
      %v1365 = vsel %vm512, %v1360, 0
      %v1368 = vsel %vm512, %v1326, 0
      %v1371 = vsel %vm512, %v1327, 0
      %v1374 = vsel %vm512, %v1328, 0
      %v1377 = vsel %vm512, %v1329, 0
      %v1380 = vsel %vm512, %v1330, 0
      %v1383 = vsel %vm512, %v1331, 0
      %v1386 = vsel %vm512, %v1332, 0
      %v1389 = vsel %vm512, %v1333, 0
      %v1392 = vsel %vm512, %v1334, 0
      %v1395 = vsel %vm512, %v1335, 0
      %v1398 = vsel %vm512, %v1336, 0
      %v1401 = vsel %vm512, %v1337, 0
      %v1404 = vsel %vm512, %v1338, 0
      %v1407 = vsel %vm512, %v1339, 0
      %v1410 = vsel %vm512, %v1340, 0
      %v1413 = vsel %vm512, %v1341, 0
      %v1416 = vsel %vm512, %v1342, 0
      %v1419 = vsel %vm512, %v1343, 0
      %v1422 = vsel %vm512, %v1344, 0
      %v1425 = vsel %vm512, %v1345, 0
      %v1428 = vsel %vm512, %v1346, 0
      %v1431 = vsel %vm512, %v1347, 0
      %v1434 = vsel %vm512, %v1348, 0
      %v1437 = vsel %vm512, %v1349, 0
      %v1440 = vsel %vm512, %v1350, 0
      %v1443 = vsel %vm512, %v1351, 0
      %v1446 = vsel %vm512, %v1352, 0
      %v1449 = vsel %vm512, %v1353, 0
      %v1452 = vsel %vm512, %v1354, 0
      %v1455 = vsel %vm512, %v1355, 0
      %v1458 = vsel %vm512, %v1356, 0
      %v1461 = vsel %vm512, %v1357, 0
      %1463 = vmatpush.xpose.msra.mxu0 %v1413
      %1464 = vmatpush.xpose.msra.mxu0 %v1410
      %1465 = vmatpush.xpose.msra.mxu0 %v1407
      %1466 = vmatpush.xpose.msra.mxu0 %v1404
      %1467 = vmatpush.xpose.msra.mxu0 %v1401
      %1468 = vmatpush.xpose.msra.mxu0 %v1398
      %1469 = vmatpush.xpose.msra.mxu0 %v1395
      %1470 = vmatpush.xpose.msra.mxu0 %v1392
      %1471 = vmatpush.xpose.msra.mxu0 %v1389
      %1472 = vmatpush.xpose.msra.mxu0 %v1386
      %1473 = vmatpush.xpose.msra.mxu0 %v1383
      %1474 = vmatpush.xpose.msra.mxu0 %v1380
      %1475 = vmatpush.xpose.msra.mxu0 %v1377
      %1476 = vmatpush.xpose.msra.mxu0 %v1374
      %1477 = vmatpush.xpose.msra.mxu0 %v1371
      %1478 = vmatpush.xpose.msra.mxu0 %v1368
      %1479 = vmatmul.f32.gmra.mxu0 %v1362
      %v1480 = vpop.f32.mrf.mxu0
      %v1481 = vadd.f32 0.0, %v1480
      %1482 = vmatmul.f32.gmra.mxu0 %v1365
      %v1483 = vpop.f32.mrf.mxu0
      %v1484 = vadd.f32 0.0, %v1483
      %1485 = vdwg.mxu0
      %1486 = vmatpush.xpose.msra.mxu0 %v1461
      %1487 = vmatpush.xpose.msra.mxu0 %v1458
      %1488 = vmatpush.xpose.msra.mxu0 %v1455
      %1489 = vmatpush.xpose.msra.mxu0 %v1452
      %1490 = vmatpush.xpose.msra.mxu0 %v1449
      %1491 = vmatpush.xpose.msra.mxu0 %v1446
      %1492 = vmatpush.xpose.msra.mxu0 %v1443
      %1493 = vmatpush.xpose.msra.mxu0 %v1440
      %1494 = vmatpush.xpose.msra.mxu0 %v1437
      %1495 = vmatpush.xpose.msra.mxu0 %v1434
      %1496 = vmatpush.xpose.msra.mxu0 %v1431
      %1497 = vmatpush.xpose.msra.mxu0 %v1428
      %1498 = vmatpush.xpose.msra.mxu0 %v1425
      %1499 = vmatpush.xpose.msra.mxu0 %v1422
      %1500 = vmatpush.xpose.msra.mxu0 %v1419
      %1501 = vmatpush.xpose.msra.mxu0 %v1416
      %1502 = vmatmul.f32.gmra.mxu0 %v1362
      %v1503 = vpop.f32.mrf.mxu0
      %v1504 = vadd.f32 0.0, %v1503
      %1505 = vmatmul.f32.gmra.mxu0 %v1365
      %v1506 = vpop.f32.mrf.mxu0
      %v1507 = vadd.f32 0.0, %v1506
      %1508 = vdwg.mxu0
      %v1509 = vadd.f32 %v1322, %v1481
      %v1510 = vadd.f32 %v1323, %v1504
      %v1511 = vadd.f32 %v1324, %v1484
      %v1512 = vadd.f32 %v1325, %v1507
      %v1513 = vld [vmem:[%s521 + $0x9] sm:$0xff]
      %v1514 = vld [vmem:[%s521 + $0x11] sm:$0xff]
      %v1515 = vld [vmem:[%s521 + $0x29] sm:$0xff]
      %v1516 = vld [vmem:[%s521 + $0x31] sm:$0xff]
      %v1517 = vld [vmem:[%s521 + $0x49] sm:$0xff]
      %v1518 = vld [vmem:[%s521 + $0x51] sm:$0xff]
      %v1519 = vld [vmem:[%s521 + $0x69] sm:$0xff]
      %v1520 = vld [vmem:[%s521 + $0x71] sm:$0xff]
      %v1521 = vld [vmem:[%s521 + $0x89] sm:$0xff]
      %v1522 = vld [vmem:[%s521 + $0x91] sm:$0xff]
      %v1523 = vld [vmem:[%s521 + $0xa9] sm:$0xff]
      %v1524 = vld [vmem:[%s521 + $0xb1] sm:$0xff]
      %v1525 = vld [vmem:[%s521 + $0xc9] sm:$0xff]
      %v1526 = vld [vmem:[%s521 + $0xd1] sm:$0xff]
      %v1527 = vld [vmem:[%s521 + $0xe9] sm:$0xff]
      %v1528 = vld [vmem:[%s521 + $0xf1] sm:$0xff]
      %v1529 = vld [vmem:[%s521 + $0x109] sm:$0xff]
      %v1530 = vld [vmem:[%s521 + $0x111] sm:$0xff]
      %v1531 = vld [vmem:[%s521 + $0x129] sm:$0xff]
      %v1532 = vld [vmem:[%s521 + $0x131] sm:$0xff]
      %v1533 = vld [vmem:[%s521 + $0x149] sm:$0xff]
      %v1534 = vld [vmem:[%s521 + $0x151] sm:$0xff]
      %v1535 = vld [vmem:[%s521 + $0x169] sm:$0xff]
      %v1536 = vld [vmem:[%s521 + $0x171] sm:$0xff]
      %v1537 = vld [vmem:[%s521 + $0x189] sm:$0xff]
      %v1538 = vld [vmem:[%s521 + $0x191] sm:$0xff]
      %v1539 = vld [vmem:[%s521 + $0x1a9] sm:$0xff]
      %v1540 = vld [vmem:[%s521 + $0x1b1] sm:$0xff]
      %v1541 = vld [vmem:[%s521 + $0x1c9] sm:$0xff]
      %v1542 = vld [vmem:[%s521 + $0x1d1] sm:$0xff]
      %v1543 = vld [vmem:[%s521 + $0x1e9] sm:$0xff]
      %v1544 = vld [vmem:[%s521 + $0x1f1] sm:$0xff]
      %s1545 = scalar_lea.vmem %s3, 80
      %v1546 = vld [vmem:[%s1545] sm:$0xff]
      %v1547 = vld [vmem:[%s1545 + $0x8] sm:$0xff]
      %v1549 = vsel %vm512, %v1546, 0
      %v1552 = vsel %vm512, %v1547, 0
      %v1555 = vsel %vm512, %v1513, 0
      %v1558 = vsel %vm512, %v1514, 0
      %v1561 = vsel %vm512, %v1515, 0
      %v1564 = vsel %vm512, %v1516, 0
      %v1567 = vsel %vm512, %v1517, 0
      %v1570 = vsel %vm512, %v1518, 0
      %v1573 = vsel %vm512, %v1519, 0
      %v1576 = vsel %vm512, %v1520, 0
      %v1579 = vsel %vm512, %v1521, 0
      %v1582 = vsel %vm512, %v1522, 0
      %v1585 = vsel %vm512, %v1523, 0
      %v1588 = vsel %vm512, %v1524, 0
      %v1591 = vsel %vm512, %v1525, 0
      %v1594 = vsel %vm512, %v1526, 0
      %v1597 = vsel %vm512, %v1527, 0
      %v1600 = vsel %vm512, %v1528, 0
      %v1603 = vsel %vm512, %v1529, 0
      %v1606 = vsel %vm512, %v1530, 0
      %v1609 = vsel %vm512, %v1531, 0
      %v1612 = vsel %vm512, %v1532, 0
      %v1615 = vsel %vm512, %v1533, 0
      %v1618 = vsel %vm512, %v1534, 0
      %v1621 = vsel %vm512, %v1535, 0
      %v1624 = vsel %vm512, %v1536, 0
      %v1627 = vsel %vm512, %v1537, 0
      %v1630 = vsel %vm512, %v1538, 0
      %v1633 = vsel %vm512, %v1539, 0
      %v1636 = vsel %vm512, %v1540, 0
      %v1639 = vsel %vm512, %v1541, 0
      %v1642 = vsel %vm512, %v1542, 0
      %v1645 = vsel %vm512, %v1543, 0
      %v1648 = vsel %vm512, %v1544, 0
      %1650 = vmatpush.xpose.msra.mxu0 %v1600
      %1651 = vmatpush.xpose.msra.mxu0 %v1597
      %1652 = vmatpush.xpose.msra.mxu0 %v1594
      %1653 = vmatpush.xpose.msra.mxu0 %v1591
      %1654 = vmatpush.xpose.msra.mxu0 %v1588
      %1655 = vmatpush.xpose.msra.mxu0 %v1585
      %1656 = vmatpush.xpose.msra.mxu0 %v1582
      %1657 = vmatpush.xpose.msra.mxu0 %v1579
      %1658 = vmatpush.xpose.msra.mxu0 %v1576
      %1659 = vmatpush.xpose.msra.mxu0 %v1573
      %1660 = vmatpush.xpose.msra.mxu0 %v1570
      %1661 = vmatpush.xpose.msra.mxu0 %v1567
      %1662 = vmatpush.xpose.msra.mxu0 %v1564
      %1663 = vmatpush.xpose.msra.mxu0 %v1561
      %1664 = vmatpush.xpose.msra.mxu0 %v1558
      %1665 = vmatpush.xpose.msra.mxu0 %v1555
      %1666 = vmatmul.f32.gmra.mxu0 %v1549
      %v1667 = vpop.f32.mrf.mxu0
      %v1668 = vadd.f32 0.0, %v1667
      %1669 = vmatmul.f32.gmra.mxu0 %v1552
      %v1670 = vpop.f32.mrf.mxu0
      %v1671 = vadd.f32 0.0, %v1670
      %1672 = vdwg.mxu0
      %1673 = vmatpush.xpose.msra.mxu0 %v1648
      %1674 = vmatpush.xpose.msra.mxu0 %v1645
      %1675 = vmatpush.xpose.msra.mxu0 %v1642
      %1676 = vmatpush.xpose.msra.mxu0 %v1639
      %1677 = vmatpush.xpose.msra.mxu0 %v1636
      %1678 = vmatpush.xpose.msra.mxu0 %v1633
      %1679 = vmatpush.xpose.msra.mxu0 %v1630
      %1680 = vmatpush.xpose.msra.mxu0 %v1627
      %1681 = vmatpush.xpose.msra.mxu0 %v1624
      %1682 = vmatpush.xpose.msra.mxu0 %v1621
      %1683 = vmatpush.xpose.msra.mxu0 %v1618
      %1684 = vmatpush.xpose.msra.mxu0 %v1615
      %1685 = vmatpush.xpose.msra.mxu0 %v1612
      %1686 = vmatpush.xpose.msra.mxu0 %v1609
      %1687 = vmatpush.xpose.msra.mxu0 %v1606
      %1688 = vmatpush.xpose.msra.mxu0 %v1603
      %1689 = vmatmul.f32.gmra.mxu0 %v1549
      %v1690 = vpop.f32.mrf.mxu0
      %v1691 = vadd.f32 0.0, %v1690
      %1692 = vmatmul.f32.gmra.mxu0 %v1552
      %v1693 = vpop.f32.mrf.mxu0
      %v1694 = vadd.f32 0.0, %v1693
      %1695 = vdwg.mxu0
      %v1696 = vadd.f32 %v1509, %v1668
      %v1697 = vadd.f32 %v1510, %v1691
      %v1698 = vadd.f32 %v1511, %v1671
      %v1699 = vadd.f32 %v1512, %v1694
      %s1700 = scalar_lea.vmem [#allocation2], 64
      %v1701 = vld [vmem:[%s1700 + $0x7] sm:$0xff]
      %v1702 = vld [vmem:[%s1700 + $0xf] sm:$0xff]
      %v1703 = vld [vmem:[%s1700 + $0x27] sm:$0xff]
      %v1704 = vld [vmem:[%s1700 + $0x2f] sm:$0xff]
      %v1705 = vld [vmem:[%s1700 + $0x47] sm:$0xff]
      %v1706 = vld [vmem:[%s1700 + $0x4f] sm:$0xff]
      %v1707 = vld [vmem:[%s1700 + $0x67] sm:$0xff]
      %v1708 = vld [vmem:[%s1700 + $0x6f] sm:$0xff]
      %v1709 = vld [vmem:[%s1700 + $0x87] sm:$0xff]
      %v1710 = vld [vmem:[%s1700 + $0x8f] sm:$0xff]
      %v1711 = vld [vmem:[%s1700 + $0xa7] sm:$0xff]
      %v1712 = vld [vmem:[%s1700 + $0xaf] sm:$0xff]
      %v1713 = vld [vmem:[%s1700 + $0xc7] sm:$0xff]
      %v1714 = vld [vmem:[%s1700 + $0xcf] sm:$0xff]
      %v1715 = vld [vmem:[%s1700 + $0xe7] sm:$0xff]
      %v1716 = vld [vmem:[%s1700 + $0xef] sm:$0xff]
      %v1717 = vld [vmem:[%s1700 + $0x107] sm:$0xff]
      %v1718 = vld [vmem:[%s1700 + $0x10f] sm:$0xff]
      %v1719 = vld [vmem:[%s1700 + $0x127] sm:$0xff]
      %v1720 = vld [vmem:[%s1700 + $0x12f] sm:$0xff]
      %v1721 = vld [vmem:[%s1700 + $0x147] sm:$0xff]
      %v1722 = vld [vmem:[%s1700 + $0x14f] sm:$0xff]
      %v1723 = vld [vmem:[%s1700 + $0x167] sm:$0xff]
      %v1724 = vld [vmem:[%s1700 + $0x16f] sm:$0xff]
      %v1725 = vld [vmem:[%s1700 + $0x187] sm:$0xff]
      %v1726 = vld [vmem:[%s1700 + $0x18f] sm:$0xff]
      %v1727 = vld [vmem:[%s1700 + $0x1a7] sm:$0xff]
      %v1728 = vld [vmem:[%s1700 + $0x1af] sm:$0xff]
      %v1729 = vld [vmem:[%s1700 + $0x1c7] sm:$0xff]
      %v1730 = vld [vmem:[%s1700 + $0x1cf] sm:$0xff]
      %v1731 = vld [vmem:[%s1700 + $0x1e7] sm:$0xff]
      %v1732 = vld [vmem:[%s1700 + $0x1ef] sm:$0xff]
      %s1733 = scalar_lea.vmem %s3, 96
      %v1734 = vld [vmem:[%s1733] sm:$0xff]
      %v1735 = vld [vmem:[%s1733 + $0x8] sm:$0xff]
      %v1737 = vsel %vm512, %v1734, 0
      %v1740 = vsel %vm512, %v1735, 0
      %v1743 = vsel %vm512, %v1701, 0
      %v1746 = vsel %vm512, %v1702, 0
      %v1749 = vsel %vm512, %v1703, 0
      %v1752 = vsel %vm512, %v1704, 0
      %v1755 = vsel %vm512, %v1705, 0
      %v1758 = vsel %vm512, %v1706, 0
      %v1761 = vsel %vm512, %v1707, 0
      %v1764 = vsel %vm512, %v1708, 0
      %v1767 = vsel %vm512, %v1709, 0
      %v1770 = vsel %vm512, %v1710, 0
      %v1773 = vsel %vm512, %v1711, 0
      %v1776 = vsel %vm512, %v1712, 0
      %v1779 = vsel %vm512, %v1713, 0
      %v1782 = vsel %vm512, %v1714, 0
      %v1785 = vsel %vm512, %v1715, 0
      %v1788 = vsel %vm512, %v1716, 0
      %v1791 = vsel %vm512, %v1717, 0
      %v1794 = vsel %vm512, %v1718, 0
      %v1797 = vsel %vm512, %v1719, 0
      %v1800 = vsel %vm512, %v1720, 0
      %v1803 = vsel %vm512, %v1721, 0
      %v1806 = vsel %vm512, %v1722, 0
      %v1809 = vsel %vm512, %v1723, 0
      %v1812 = vsel %vm512, %v1724, 0
      %v1815 = vsel %vm512, %v1725, 0
      %v1818 = vsel %vm512, %v1726, 0
      %v1821 = vsel %vm512, %v1727, 0
      %v1824 = vsel %vm512, %v1728, 0
      %v1827 = vsel %vm512, %v1729, 0
      %v1830 = vsel %vm512, %v1730, 0
      %v1833 = vsel %vm512, %v1731, 0
      %v1836 = vsel %vm512, %v1732, 0
      %1838 = vmatpush.xpose.msra.mxu0 %v1788
      %1839 = vmatpush.xpose.msra.mxu0 %v1785
      %1840 = vmatpush.xpose.msra.mxu0 %v1782
      %1841 = vmatpush.xpose.msra.mxu0 %v1779
      %1842 = vmatpush.xpose.msra.mxu0 %v1776
      %1843 = vmatpush.xpose.msra.mxu0 %v1773
      %1844 = vmatpush.xpose.msra.mxu0 %v1770
      %1845 = vmatpush.xpose.msra.mxu0 %v1767
      %1846 = vmatpush.xpose.msra.mxu0 %v1764
      %1847 = vmatpush.xpose.msra.mxu0 %v1761
      %1848 = vmatpush.xpose.msra.mxu0 %v1758
      %1849 = vmatpush.xpose.msra.mxu0 %v1755
      %1850 = vmatpush.xpose.msra.mxu0 %v1752
      %1851 = vmatpush.xpose.msra.mxu0 %v1749
      %1852 = vmatpush.xpose.msra.mxu0 %v1746
      %1853 = vmatpush.xpose.msra.mxu0 %v1743
      %1854 = vmatmul.f32.gmra.mxu0 %v1737
      %v1855 = vpop.f32.mrf.mxu0
      %v1856 = vadd.f32 0.0, %v1855
      %1857 = vmatmul.f32.gmra.mxu0 %v1740
      %v1858 = vpop.f32.mrf.mxu0
      %v1859 = vadd.f32 0.0, %v1858
      %1860 = vdwg.mxu0
      %1861 = vmatpush.xpose.msra.mxu0 %v1836
      %1862 = vmatpush.xpose.msra.mxu0 %v1833
      %1863 = vmatpush.xpose.msra.mxu0 %v1830
      %1864 = vmatpush.xpose.msra.mxu0 %v1827
      %1865 = vmatpush.xpose.msra.mxu0 %v1824
      %1866 = vmatpush.xpose.msra.mxu0 %v1821
      %1867 = vmatpush.xpose.msra.mxu0 %v1818
      %1868 = vmatpush.xpose.msra.mxu0 %v1815
      %1869 = vmatpush.xpose.msra.mxu0 %v1812
      %1870 = vmatpush.xpose.msra.mxu0 %v1809
      %1871 = vmatpush.xpose.msra.mxu0 %v1806
      %1872 = vmatpush.xpose.msra.mxu0 %v1803
      %1873 = vmatpush.xpose.msra.mxu0 %v1800
      %1874 = vmatpush.xpose.msra.mxu0 %v1797
      %1875 = vmatpush.xpose.msra.mxu0 %v1794
      %1876 = vmatpush.xpose.msra.mxu0 %v1791
      %1877 = vmatmul.f32.gmra.mxu0 %v1737
      %v1878 = vpop.f32.mrf.mxu0
      %v1879 = vadd.f32 0.0, %v1878
      %1880 = vmatmul.f32.gmra.mxu0 %v1740
      %v1881 = vpop.f32.mrf.mxu0
      %v1882 = vadd.f32 0.0, %v1881
      %1883 = vdwg.mxu0
      %v1884 = vadd.f32 %v1696, %v1856
      %v1885 = vadd.f32 %v1697, %v1879
      %v1886 = vadd.f32 %v1698, %v1859
      %v1887 = vadd.f32 %v1699, %v1882
      %v1888 = vld [vmem:[%s1700 + $0x8] sm:$0xff]
      %v1889 = vld [vmem:[%s1700 + $0x10] sm:$0xff]
      %v1890 = vld [vmem:[%s1700 + $0x28] sm:$0xff]
      %v1891 = vld [vmem:[%s1700 + $0x30] sm:$0xff]
      %v1892 = vld [vmem:[%s1700 + $0x48] sm:$0xff]
      %v1893 = vld [vmem:[%s1700 + $0x50] sm:$0xff]
      %v1894 = vld [vmem:[%s1700 + $0x68] sm:$0xff]
      %v1895 = vld [vmem:[%s1700 + $0x70] sm:$0xff]
      %v1896 = vld [vmem:[%s1700 + $0x88] sm:$0xff]
      %v1897 = vld [vmem:[%s1700 + $0x90] sm:$0xff]
      %v1898 = vld [vmem:[%s1700 + $0xa8] sm:$0xff]
      %v1899 = vld [vmem:[%s1700 + $0xb0] sm:$0xff]
      %v1900 = vld [vmem:[%s1700 + $0xc8] sm:$0xff]
      %v1901 = vld [vmem:[%s1700 + $0xd0] sm:$0xff]
      %v1902 = vld [vmem:[%s1700 + $0xe8] sm:$0xff]
      %v1903 = vld [vmem:[%s1700 + $0xf0] sm:$0xff]
      %v1904 = vld [vmem:[%s1700 + $0x108] sm:$0xff]
      %v1905 = vld [vmem:[%s1700 + $0x110] sm:$0xff]
      %v1906 = vld [vmem:[%s1700 + $0x128] sm:$0xff]
      %v1907 = vld [vmem:[%s1700 + $0x130] sm:$0xff]
      %v1908 = vld [vmem:[%s1700 + $0x148] sm:$0xff]
      %v1909 = vld [vmem:[%s1700 + $0x150] sm:$0xff]
      %v1910 = vld [vmem:[%s1700 + $0x168] sm:$0xff]
      %v1911 = vld [vmem:[%s1700 + $0x170] sm:$0xff]
      %v1912 = vld [vmem:[%s1700 + $0x188] sm:$0xff]
      %v1913 = vld [vmem:[%s1700 + $0x190] sm:$0xff]
      %v1914 = vld [vmem:[%s1700 + $0x1a8] sm:$0xff]
      %v1915 = vld [vmem:[%s1700 + $0x1b0] sm:$0xff]
      %v1916 = vld [vmem:[%s1700 + $0x1c8] sm:$0xff]
      %v1917 = vld [vmem:[%s1700 + $0x1d0] sm:$0xff]
      %v1918 = vld [vmem:[%s1700 + $0x1e8] sm:$0xff]
      %v1919 = vld [vmem:[%s1700 + $0x1f0] sm:$0xff]
      %s1920 = scalar_lea.vmem %s3, 112
      %v1921 = vld [vmem:[%s1920] sm:$0xff]
      %v1922 = vld [vmem:[%s1920 + $0x8] sm:$0xff]
      %v1924 = vsel %vm512, %v1921, 0
      %v1927 = vsel %vm512, %v1922, 0
      %v1930 = vsel %vm512, %v1888, 0
      %v1933 = vsel %vm512, %v1889, 0
      %v1936 = vsel %vm512, %v1890, 0
      %v1939 = vsel %vm512, %v1891, 0
      %v1942 = vsel %vm512, %v1892, 0
      %v1945 = vsel %vm512, %v1893, 0
      %v1948 = vsel %vm512, %v1894, 0
      %v1951 = vsel %vm512, %v1895, 0
      %v1954 = vsel %vm512, %v1896, 0
      %v1957 = vsel %vm512, %v1897, 0
      %v1960 = vsel %vm512, %v1898, 0
      %v1963 = vsel %vm512, %v1899, 0
      %v1966 = vsel %vm512, %v1900, 0
      %v1969 = vsel %vm512, %v1901, 0
      %v1972 = vsel %vm512, %v1902, 0
      %v1975 = vsel %vm512, %v1903, 0
      %v1978 = vsel %vm512, %v1904, 0
      %v1981 = vsel %vm512, %v1905, 0
      %v1984 = vsel %vm512, %v1906, 0
      %v1987 = vsel %vm512, %v1907, 0
      %v1990 = vsel %vm512, %v1908, 0
      %v1993 = vsel %vm512, %v1909, 0
      %v1996 = vsel %vm512, %v1910, 0
      %v1999 = vsel %vm512, %v1911, 0
      %v2002 = vsel %vm512, %v1912, 0
      %v2005 = vsel %vm512, %v1913, 0
      %v2008 = vsel %vm512, %v1914, 0
      %v2011 = vsel %vm512, %v1915, 0
      %v2014 = vsel %vm512, %v1916, 0
      %v2017 = vsel %vm512, %v1917, 0
      %v2020 = vsel %vm512, %v1918, 0
      %v2023 = vsel %vm512, %v1919, 0
      %2025 = vmatpush.xpose.msra.mxu0 %v1975
      %2026 = vmatpush.xpose.msra.mxu0 %v1972
      %2027 = vmatpush.xpose.msra.mxu0 %v1969
      %2028 = vmatpush.xpose.msra.mxu0 %v1966
      %2029 = vmatpush.xpose.msra.mxu0 %v1963
      %2030 = vmatpush.xpose.msra.mxu0 %v1960
      %2031 = vmatpush.xpose.msra.mxu0 %v1957
      %2032 = vmatpush.xpose.msra.mxu0 %v1954
      %2033 = vmatpush.xpose.msra.mxu0 %v1951
      %2034 = vmatpush.xpose.msra.mxu0 %v1948
      %2035 = vmatpush.xpose.msra.mxu0 %v1945
      %2036 = vmatpush.xpose.msra.mxu0 %v1942
      %2037 = vmatpush.xpose.msra.mxu0 %v1939
      %2038 = vmatpush.xpose.msra.mxu0 %v1936
      %2039 = vmatpush.xpose.msra.mxu0 %v1933
      %2040 = vmatpush.xpose.msra.mxu0 %v1930
      %2041 = vmatmul.f32.gmra.mxu0 %v1924
      %v2042 = vpop.f32.mrf.mxu0
      %v2043 = vadd.f32 0.0, %v2042
      %2044 = vmatmul.f32.gmra.mxu0 %v1927
      %v2045 = vpop.f32.mrf.mxu0
      %v2046 = vadd.f32 0.0, %v2045
      %2047 = vdwg.mxu0
      %2048 = vmatpush.xpose.msra.mxu0 %v2023
      %2049 = vmatpush.xpose.msra.mxu0 %v2020
      %2050 = vmatpush.xpose.msra.mxu0 %v2017
      %2051 = vmatpush.xpose.msra.mxu0 %v2014
      %2052 = vmatpush.xpose.msra.mxu0 %v2011
      %2053 = vmatpush.xpose.msra.mxu0 %v2008
      %2054 = vmatpush.xpose.msra.mxu0 %v2005
      %2055 = vmatpush.xpose.msra.mxu0 %v2002
      %2056 = vmatpush.xpose.msra.mxu0 %v1999
      %2057 = vmatpush.xpose.msra.mxu0 %v1996
      %2058 = vmatpush.xpose.msra.mxu0 %v1993
      %2059 = vmatpush.xpose.msra.mxu0 %v1990
      %2060 = vmatpush.xpose.msra.mxu0 %v1987
      %2061 = vmatpush.xpose.msra.mxu0 %v1984
      %2062 = vmatpush.xpose.msra.mxu0 %v1981
      %2063 = vmatpush.xpose.msra.mxu0 %v1978
      %2064 = vmatmul.f32.gmra.mxu0 %v1924
      %v2065 = vpop.f32.mrf.mxu0
      %v2066 = vadd.f32 0.0, %v2065
      %2067 = vmatmul.f32.gmra.mxu0 %v1927
      %v2068 = vpop.f32.mrf.mxu0
      %v2069 = vadd.f32 0.0, %v2068
      %2070 = vdwg.mxu0
      %v2071 = vadd.f32 %v1884, %v2043
      %v2072 = vadd.f32 %v1885, %v2066
      %v2073 = vadd.f32 %v1886, %v2046
      %v2074 = vadd.f32 %v1887, %v2069
      %v2075 = vld [vmem:[%s1700 + $0x9] sm:$0xff]
      %v2076 = vld [vmem:[%s1700 + $0x11] sm:$0xff]
      %v2077 = vld [vmem:[%s1700 + $0x29] sm:$0xff]
      %v2078 = vld [vmem:[%s1700 + $0x31] sm:$0xff]
      %v2079 = vld [vmem:[%s1700 + $0x49] sm:$0xff]
      %v2080 = vld [vmem:[%s1700 + $0x51] sm:$0xff]
      %v2081 = vld [vmem:[%s1700 + $0x69] sm:$0xff]
      %v2082 = vld [vmem:[%s1700 + $0x71] sm:$0xff]
      %v2083 = vld [vmem:[%s1700 + $0x89] sm:$0xff]
      %v2084 = vld [vmem:[%s1700 + $0x91] sm:$0xff]
      %v2085 = vld [vmem:[%s1700 + $0xa9] sm:$0xff]
      %v2086 = vld [vmem:[%s1700 + $0xb1] sm:$0xff]
      %v2087 = vld [vmem:[%s1700 + $0xc9] sm:$0xff]
      %v2088 = vld [vmem:[%s1700 + $0xd1] sm:$0xff]
      %v2089 = vld [vmem:[%s1700 + $0xe9] sm:$0xff]
      %v2090 = vld [vmem:[%s1700 + $0xf1] sm:$0xff]
      %v2091 = vld [vmem:[%s1700 + $0x109] sm:$0xff]
      %v2092 = vld [vmem:[%s1700 + $0x111] sm:$0xff]
      %v2093 = vld [vmem:[%s1700 + $0x129] sm:$0xff]
      %v2094 = vld [vmem:[%s1700 + $0x131] sm:$0xff]
      %v2095 = vld [vmem:[%s1700 + $0x149] sm:$0xff]
      %v2096 = vld [vmem:[%s1700 + $0x151] sm:$0xff]
      %v2097 = vld [vmem:[%s1700 + $0x169] sm:$0xff]
      %v2098 = vld [vmem:[%s1700 + $0x171] sm:$0xff]
      %v2099 = vld [vmem:[%s1700 + $0x189] sm:$0xff]
      %v2100 = vld [vmem:[%s1700 + $0x191] sm:$0xff]
      %v2101 = vld [vmem:[%s1700 + $0x1a9] sm:$0xff]
      %v2102 = vld [vmem:[%s1700 + $0x1b1] sm:$0xff]
      %v2103 = vld [vmem:[%s1700 + $0x1c9] sm:$0xff]
      %v2104 = vld [vmem:[%s1700 + $0x1d1] sm:$0xff]
      %v2105 = vld [vmem:[%s1700 + $0x1e9] sm:$0xff]
      %v2106 = vld [vmem:[%s1700 + $0x1f1] sm:$0xff]
      %s2107 = scalar_lea.vmem %s3, 128
      %v2108 = vld [vmem:[%s2107] sm:$0xff]
      %v2109 = vld [vmem:[%s2107 + $0x8] sm:$0xff]
      %v2111 = vsel %vm512, %v2108, 0
      %v2114 = vsel %vm512, %v2109, 0
      %v2117 = vsel %vm512, %v2075, 0
      %v2120 = vsel %vm512, %v2076, 0
      %v2123 = vsel %vm512, %v2077, 0
      %v2126 = vsel %vm512, %v2078, 0
      %v2129 = vsel %vm512, %v2079, 0
      %v2132 = vsel %vm512, %v2080, 0
      %v2135 = vsel %vm512, %v2081, 0
      %v2138 = vsel %vm512, %v2082, 0
      %v2141 = vsel %vm512, %v2083, 0
      %v2144 = vsel %vm512, %v2084, 0
      %v2147 = vsel %vm512, %v2085, 0
      %v2150 = vsel %vm512, %v2086, 0
      %v2153 = vsel %vm512, %v2087, 0
      %v2156 = vsel %vm512, %v2088, 0
      %v2159 = vsel %vm512, %v2089, 0
      %v2162 = vsel %vm512, %v2090, 0
      %v2165 = vsel %vm512, %v2091, 0
      %v2168 = vsel %vm512, %v2092, 0
      %v2171 = vsel %vm512, %v2093, 0
      %v2174 = vsel %vm512, %v2094, 0
      %v2177 = vsel %vm512, %v2095, 0
      %v2180 = vsel %vm512, %v2096, 0
      %v2183 = vsel %vm512, %v2097, 0
      %v2186 = vsel %vm512, %v2098, 0
      %v2189 = vsel %vm512, %v2099, 0
      %v2192 = vsel %vm512, %v2100, 0
      %v2195 = vsel %vm512, %v2101, 0
      %v2198 = vsel %vm512, %v2102, 0
      %v2201 = vsel %vm512, %v2103, 0
      %v2204 = vsel %vm512, %v2104, 0
      %v2207 = vsel %vm512, %v2105, 0
      %v2210 = vsel %vm512, %v2106, 0
      %2212 = vmatpush.xpose.msra.mxu0 %v2162
      %2213 = vmatpush.xpose.msra.mxu0 %v2159
      %2214 = vmatpush.xpose.msra.mxu0 %v2156
      %2215 = vmatpush.xpose.msra.mxu0 %v2153
      %2216 = vmatpush.xpose.msra.mxu0 %v2150
      %2217 = vmatpush.xpose.msra.mxu0 %v2147
      %2218 = vmatpush.xpose.msra.mxu0 %v2144
      %2219 = vmatpush.xpose.msra.mxu0 %v2141
      %2220 = vmatpush.xpose.msra.mxu0 %v2138
      %2221 = vmatpush.xpose.msra.mxu0 %v2135
      %2222 = vmatpush.xpose.msra.mxu0 %v2132
      %2223 = vmatpush.xpose.msra.mxu0 %v2129
      %2224 = vmatpush.xpose.msra.mxu0 %v2126
      %2225 = vmatpush.xpose.msra.mxu0 %v2123
      %2226 = vmatpush.xpose.msra.mxu0 %v2120
      %2227 = vmatpush.xpose.msra.mxu0 %v2117
      %2228 = vmatmul.f32.gmra.mxu0 %v2111
      %v2229 = vpop.f32.mrf.mxu0
      %v2230 = vadd.f32 0.0, %v2229
      %2231 = vmatmul.f32.gmra.mxu0 %v2114
      %v2232 = vpop.f32.mrf.mxu0
      %v2233 = vadd.f32 0.0, %v2232
      %2234 = vdwg.mxu0
      %2235 = vmatpush.xpose.msra.mxu0 %v2210
      %2236 = vmatpush.xpose.msra.mxu0 %v2207
      %2237 = vmatpush.xpose.msra.mxu0 %v2204
      %2238 = vmatpush.xpose.msra.mxu0 %v2201
      %2239 = vmatpush.xpose.msra.mxu0 %v2198
      %2240 = vmatpush.xpose.msra.mxu0 %v2195
      %2241 = vmatpush.xpose.msra.mxu0 %v2192
      %2242 = vmatpush.xpose.msra.mxu0 %v2189
      %2243 = vmatpush.xpose.msra.mxu0 %v2186
      %2244 = vmatpush.xpose.msra.mxu0 %v2183
      %2245 = vmatpush.xpose.msra.mxu0 %v2180
      %2246 = vmatpush.xpose.msra.mxu0 %v2177
      %2247 = vmatpush.xpose.msra.mxu0 %v2174
      %2248 = vmatpush.xpose.msra.mxu0 %v2171
      %2249 = vmatpush.xpose.msra.mxu0 %v2168
      %2250 = vmatpush.xpose.msra.mxu0 %v2165
      %2251 = vmatmul.f32.gmra.mxu0 %v2111
      %v2252 = vpop.f32.mrf.mxu0
      %v2253 = vadd.f32 0.0, %v2252
      %2254 = vmatmul.f32.gmra.mxu0 %v2114
      %v2255 = vpop.f32.mrf.mxu0
      %v2256 = vadd.f32 0.0, %v2255
      %2257 = vdwg.mxu0
      %v2258 = vadd.f32 %v2071, %v2230
      %v2259 = vadd.f32 %v2072, %v2253
      %v2260 = vadd.f32 %v2073, %v2233
      %v2261 = vadd.f32 %v2074, %v2256
      %v2262 = vld [vmem:[%s4] sm:$0xff]
      %v2263 = vld [vmem:[%s4 + $0x8] sm:$0xff]
      %2265 = vset.pattern.permute.xlu0 0
      %2266 = vperm.xlu0 %2265, %v2262
      %v2267 = vpop.permute.xlu0 %2266
      %2270 = vset.pattern.permute.xlu0 0
      %2271 = vperm.xlu0 %2270, %v2263
      %v2272 = vpop.permute.xlu0 %2271
      %v2274 = vadd.f32 %v2258, %v2267
      %v2275 = vadd.f32 %v2259, %v2267
      %v2276 = vadd.f32 %v2260, %v2272
      %v2277 = vadd.f32 %v2261, %v2272
      %v2278 = vmax.f32 %v2274, 0.0
      %v2279 = vmax.f32 %v2275, 0.0
      %v2280 = vmax.f32 %v2276, 0.0
      %v2281 = vmax.f32 %v2277, 0.0
      %2282 = vst [vmem:[%s224] sm:$0xff] %v2278
      %2283 = vst [vmem:[%s224 + $0x8] sm:$0xff] %v2279
      %2284 = vst [vmem:[%s224 + $0x10] sm:$0xff] %v2280
      %2285 = vst [vmem:[%s224 + $0x18] sm:$0xff] %v2281
      %p2286 = scmp.lt.s32.totalorder %s16, 1
      %s2287 = scalar_select %p2286, %s16, 1
      %s2288 = smul.addr %s2287, 4
      %s2289 = smul.addr %s2288, 8
      %s2290 = scalar_lea.vmem %s5, %s2289
      // Predicated region
      $region41: #{conv_bottleneck_forward_pallas.1} parent=39 // pred_check
        %p2291 = pneg %p144
      $region42: #{conv_bottleneck_forward_pallas.1} parent=39 // pred_check_branch
        %2293 = sbr.rel (%p2291) target = $region44
      $region43: #{conv_bottleneck_forward_pallas.1} parent=39 // pred_region
        _
      $region44: #{conv_bottleneck_forward_pallas.1} parent=39 // pred_fallthru
        _
    $region40: #{conv_bottleneck_forward_pallas.1} parent=5 // pred_fallthru
      _
    %p2294 = scmp.le.s32.totalorder 2, %s11
    // Predicated region
    $region45: #{conv_bottleneck_forward_pallas.1} parent=5 // pred_check
      %p2295 = pneg %p2294
    $region46: #{conv_bottleneck_forward_pallas.1} parent=5 // pred_check_branch
      %2297 = sbr.rel (%p2295) target = $region48
    $region47: #{conv_bottleneck_forward_pallas.1} parent=5 // pred_region
      %s2298 = ssub.s32 %s11, 2
      // Predicated region
      $region49: #{conv_bottleneck_forward_pallas.1} parent=47 // pred_check
        %p2299 = pneg %p150
      $region50: #{conv_bottleneck_forward_pallas.1} parent=47 // pred_check_branch
        %2301 = sbr.rel (%p2299) target = $region52
      $region51: #{conv_bottleneck_forward_pallas.1} parent=47 // pred_region
        %p2302 = scmp.lt.s32.totalorder %s17, 1
        %s2303 = scalar_select %p2302, %s17, 1
        %s2304 = smul.addr %s2303, 4
        %s2305 = smul.addr %s2304, 8
        %s2306 = scalar_lea.vmem %s5, %s2305
      $region52: #{conv_bottleneck_forward_pallas.1} parent=47 // pred_fallthru
        _
    $region48: #{conv_bottleneck_forward_pallas.1} parent=5 // pred_fallthru
      _
  $region6: #{conv_bottleneck_forward_pallas.1} parent=0 // loop_footer
    %s15 = sadd.s32 1, %s11
  $region7: #{conv_bottleneck_forward_pallas.1} parent=0 // loop_footer_branch
    %10 = sbr.rel target = $region3
  $region8: #{conv_bottleneck_forward_pallas.1} parent=0 // loop_exit
    _

</llo_original>
